<compile_context>
chip_gen: v7x
topology: tpu7x:2x2x1
jax: 0.10.0
libtpu: 0.0.40
codegen_flags: <defaults>
</compile_context>

<pallas_src>
import functools

import jax
import jax.numpy as jnp
from jax.experimental import pallas as pl
from jax.experimental.pallas import tpu as pltpu

_VMEM_LIMIT_BYTES = 32 * 1024 * 1024       # safe on v5e / v6e / v7x
_TILE_BUDGET_BYTES = 12 * 1024 * 1024      # per-step blocks (double-buffered) + temporaries


def _round_up(x, m):
    return (x + m - 1) // m * m


# ---------------------------------------------------------------------------
# Kernel 1: fused adapt head
#   y = Conv1x1( ReLU( Conv3x3(x) + b3 ) ) + b1
# im2col (K = 9*Cin) -> one MXU matmul -> bias/ReLU -> one MXU matmul -> bias.
# Weights arrive pre-flattened, channel-padded to x128 and cast to the MXU
# dtype (bf16 by default); biases stay f32 (added after f32 accumulation).
# ---------------------------------------------------------------------------
def _adapt_kernel(xt_ref, w3_ref, b3_ref, w1_ref, b1_ref, out_ref):
    th = out_ref.shape[1]
    w = out_ref.shape[2]
    cin = xt_ref.shape[3]
    cdtype = w3_ref.dtype                       # MXU input dtype

    xwin = xt_ref[0]                            # (th+2, W+2, cin) halo window
    taps = [xwin[dh:dh + th, dw:dw + w, :]      # 9 shifted (th, W, cin) views
            for dh in range(3) for dw in range(3)]
    im2col = jnp.concatenate(taps, axis=-1)     # (th, W, 9*cin)
    im2col = im2col.reshape(th * w, 9 * cin).astype(cdtype)

    acc = jnp.dot(im2col, w3_ref[...], preferred_element_type=jnp.float32)
    mid = jnp.maximum(acc + b3_ref[...], 0.0).astype(cdtype)
    out = jnp.dot(mid, w1_ref[...], preferred_element_type=jnp.float32)
    out = out + b1_ref[...]
    out_ref[0] = out.reshape(th, w, -1).astype(out_ref.dtype)


def _pick_row_tile(h, w, cin, cmid_p, cout_p, budget=_TILE_BUDGET_BYTES):
    """Largest row-tile TH dividing H whose per-step VMEM footprint fits the budget."""
    best = 1
    for th in range(1, h + 1):
        if h % th:
            continue
        in_blk = (th + 2) * (w + 2) * cin * 4
        out_blk = th * w * cout_p * 4
        tmp = th * w * (9 * cin * 2 + cmid_p * 6 + cout_p * 4)  # im2col + acc + mid + out
        if 2 * (in_blk + out_blk) + tmp <= budget:
            best = th
    return best


def _halo_row_tiles(x, th):
    """(N,H,W,C) -> (N*R, th+2, W+2, C): zero-padded overlapping row windows.

    With the default tile picker R is usually 1, so this reduces to a single
    spatial zero-pad (no duplication).  For R>1 the duplicated rows amount to
    only 2/th of the input, which is negligible against the conv FLOPs.
    """
    n, h, w, c = x.shape
    r = h // th
    xpad = jnp.pad(x, ((0, 0), (1, 1), (1, 1), (0, 0)))
    tiles = jnp.stack([xpad[:, i * th:i * th + th + 2] for i in range(r)], axis=1)
    return tiles.reshape(n * r, th + 2, w + 2, c)


@functools.partial(jax.jit, static_argnames=("cout", "tile_rows"))
def adapt_layer_pallas(x, w3p, b3p, w1p, b1p, *, cout, tile_rows=None):
    """x: (N,H,W,Cin) NHWC.  w3p: (9*Cin, Cmid_p), b3p: (1, Cmid_p),
    w1p: (Cmid_p, Cout_p), b1p: (1, Cout_p)."""
    n, h, w, cin = x.shape
    k9, cmid_p = w3p.shape
    assert k9 == 9 * cin
    cout_p = w1p.shape[1]

    th = tile_rows if tile_rows is not None else _pick_row_tile(h, w, cin, cmid_p, cout_p)
    assert h % th == 0, (h, th)
    r = h // th

    xt = _halo_row_tiles(x, th)                 # (N*R, th+2, W+2, Cin)

    y = pl.pallas_call(
        _adapt_kernel,
        out_shape=jax.ShapeDtypeStruct((n, h, w, cout_p), x.dtype),
        grid=(n, r),
        in_specs=[
            pl.BlockSpec((1, th + 2, w + 2, cin),
                         lambda i, j, r=r: (i * r + j, 0, 0, 0)),
            pl.BlockSpec(w3p.shape, lambda i, j: (0, 0)),
            pl.BlockSpec(b3p.shape, lambda i, j: (0, 0)),
            pl.BlockSpec(w1p.shape, lambda i, j: (0, 0)),
            pl.BlockSpec(b1p.shape, lambda i, j: (0, 0)),
        ],
        out_specs=pl.BlockSpec((1, th, w, cout_p), lambda i, j: (i, j, 0, 0)),
        compiler_params=pltpu.CompilerParams(
            dimension_semantics=("parallel", "parallel"),
            vmem_limit_bytes=_VMEM_LIMIT_BYTES),
    )(xt, w3p, b3p, w1p, b1p)

    return y if cout == cout_p else y[..., :cout]


# ---------------------------------------------------------------------------
# Kernel 2: DID_Distill.norm() — per-channel (over N,H,W) mean / unbiased std.
# Pass 1: gridded single-pass sum & sum-of-squares into a resident (2,C) acc.
# Finalize: mean / 1/(std+1e-6) computed once on the tiny (2,C) stats (XLA).
# Pass 2: gridded normalize, one per-channel FMA per element.
# ---------------------------------------------------------------------------
def _channel_stats_kernel(x_ref, stats_ref):
    @pl.when((pl.program_id(0) == 0) & (pl.program_id(1) == 0))
    def _():
        stats_ref[...] = jnp.zeros_like(stats_ref)

    c = x_ref.shape[-1]
    x = x_ref[...].astype(jnp.float32).reshape(-1, c)
    s = jnp.sum(x, axis=0, keepdims=True)          # (1, C)
    sq = jnp.sum(x * x, axis=0, keepdims=True)     # (1, C)
    stats_ref[...] += jnp.concatenate([s, sq], axis=0)


def _channel_norm_apply_kernel(x_ref, ss_ref, out_ref):
    mean = ss_ref[0:1, :]                              # (1, C)
    inv = ss_ref[1:2, :]                               # (1, C) = 1/(std + 1e-6)
    x = x_ref[...].astype(jnp.float32)
    out_ref[...] = ((x - mean) * inv).astype(out_ref.dtype)


def _pick_norm_tile(h, w, c, budget=_TILE_BUDGET_BYTES):
    best = 1
    for th in range(1, h + 1):
        if h % th:
            continue
        if 4 * th * w * c * 4 <= budget:   # input + output blocks, double-buffered
            best = th
    return best


@functools.partial(jax.jit, static_argnames=("tile_rows",))
def channel_norm_pallas(x, *, tile_rows=None):
    """Per-channel (over N,H,W) mean / unbiased-std normalization.  x: NHWC."""
    n, h, w, c = x.shape
    th = tile_rows if tile_rows is not None else _pick_norm_tile(h, w, c)
    assert h % th == 0
    r = h // th
    count = float(n * h * w)

    stats = pl.pallas_call(
        _channel_stats_kernel,
        out_shape=jax.ShapeDtypeStruct((2, c), jnp.float32),
        grid=(n, r),
        in_specs=[pl.BlockSpec((1, th, w, c), lambda i, j: (i, j, 0, 0))],
        out_specs=pl.BlockSpec((2, c), lambda i, j: (0, 0)),
        compiler_params=pltpu.CompilerParams(
            dimension_semantics=("arbitrary", "arbitrary"),
            vmem_limit_bytes=_VMEM_LIMIT_BYTES),
    )(x)

    # Finalize the per-channel scale/shift once on the tiny (2,C) stats array.
    mean = stats[0:1, :] * (1.0 / count)
    denom = max(count - 1.0, 1.0)                                  # guard N*H*W == 1
    var = jnp.maximum((stats[1:2, :] - count * mean * mean) * (1.0 / denom), 0.0)
    inv = 1.0 / (jnp.sqrt(var) + 1e-6)
    ss = jnp.concatenate([mean, inv], axis=0)                      # (2, C)

    return pl.pallas_call(
        _channel_norm_apply_kernel,
        out_shape=jax.ShapeDtypeStruct(x.shape, x.dtype),
        grid=(n, r),
        in_specs=[pl.BlockSpec((1, th, w, c), lambda i, j: (i, j, 0, 0)),
                  pl.BlockSpec((2, c), lambda i, j: (0, 0))],
        out_specs=pl.BlockSpec((1, th, w, c), lambda i, j: (i, j, 0, 0)),
        compiler_params=pltpu.CompilerParams(
            dimension_semantics=("parallel", "parallel"),
            vmem_limit_bytes=_VMEM_LIMIT_BYTES),
    )(x, ss)


# ---------------------------------------------------------------------------
# Wrapper mirroring the translatable part of DID_Distill (NHWC end-to-end)
# ---------------------------------------------------------------------------
class DIDDistillPallas:
    ADAPT_LIST = ("adapt_layer4", "adapt_layer8", "adapt_layer16", "adapt_layer32")

    def __init__(self, channels, tea_channels, key, mxu_dtype=jnp.bfloat16):
        assert len(channels) >= 6 and len(tea_channels) >= 6
        self.channels = channels
        self.tea_channels = tea_channels
        self.raw_params = []      # f32 HWIO weights / biases (reference layout)
        self.packed_params = []   # kernel layout: flattened, x128-padded, MXU dtype
        for i in range(len(self.ADAPT_LIST)):
            cin = channels[i + 2]
            cout = tea_channels[i + 2]
            key, k1, k2, k3, k4 = jax.random.split(key, 5)
            w3 = 0.05 * jax.random.normal(k1, (3, 3, cin, cout), jnp.float32)
            b3 = 0.01 * jax.random.normal(k2, (cout,), jnp.float32)
            w1 = 0.05 * jax.random.normal(k3, (cout, cout), jnp.float32)
            b1 = 0.01 * jax.random.normal(k4, (cout,), jnp.float32)
            self.raw_params.append((w3, b3, w1, b1))

            cmid_p = _round_up(cout, 128)
            cout_p = _round_up(cout, 128)
            w3p = jnp.pad(w3.reshape(9 * cin, cout),
                          ((0, 0), (0, cmid_p - cout))).astype(mxu_dtype)
            b3p = jnp.pad(b3, (0, cmid_p - cout)).reshape(1, cmid_p).astype(jnp.float32)
            w1p = jnp.pad(w1, ((0, cmid_p - cout), (0, cout_p - cout))).astype(mxu_dtype)
            b1p = jnp.pad(b1, (0, cout_p - cout)).reshape(1, cout_p).astype(jnp.float32)
            self.packed_params.append((w3p, b3p, w1p, b1p, cout))

    # ---- Pallas paths (NHWC) ----
    def adapt(self, i, x_nhwc, tile_rows=None):
        w3p, b3p, w1p, b1p, cout = self.packed_params[i]
        return adapt_layer_pallas(x_nhwc, w3p, b3p, w1p, b1p,
                                  cout=cout, tile_rows=tile_rows)

    @staticmethod
    def norm(x_nhwc):
        return channel_norm_pallas(x_nhwc)

    def __call__(self, rgb_fs_feat_nhwc):
        """'dlaup_kd' branch: distill_feature[i] = adapt_layer_i(rgb_fs_feat[i])."""
        return [self.adapt(i, f) for i, f in enumerate(rgb_fs_feat_nhwc)]

    # ---- plain-JAX f32 references for verification ----
    def adapt_reference(self, i, x_nhwc):
        w3, b3, w1, b1 = self.raw_params[i]
        y = jax.lax.conv_general_dilated(
            x_nhwc, w3, window_strides=(1, 1), padding=((1, 1), (1, 1)),
            dimension_numbers=("NHWC", "HWIO", "NHWC"))
        y = jax.nn.relu(y + b3)
        return jnp.einsum("nhwc,cd->nhwd", y, w1) + b1

    @staticmethod
    def norm_reference(x_nhwc):
        mean = x_nhwc.mean(axis=(0, 1, 2), keepdims=True)
        std = x_nhwc.std(axis=(0, 1, 2), keepdims=True, ddof=1)
        return (x_nhwc - mean) / (std + 1e-6)


if __name__ == "__main__":
    # Small stand-in for DLA34's channel list [16, 32, 64, 128, 256, 512]
    channels = [8, 8, 16, 32, 48, 64]
    tea_channels = [8, 8, 16, 32, 48, 64]

    model = DIDDistillPallas(channels, tea_channels, jax.random.PRNGKey(0))

    # Synthetic multi-scale feature maps standing in for rgb_fs_feat[::-1]
    # (outputs of the external DLAUp neck).  NHWC end-to-end.
    n = 2
    sizes = [16, 8, 8, 8]
    fkey = jax.random.PRNGKey(0)
    rgb_fs_feat = []
    for i, s in enumerate(sizes):
        fkey, sub = jax.random.split(fkey)
        rgb_fs_feat.append(
            jax.random.normal(sub, (n, s, s, channels[i + 2]), jnp.float32))

    # Run the Pallas adapt heads (hot path of the distillation branch)
    distill_feature = jax.block_until_ready(model(rgb_fs_feat))

    # Verify against plain-JAX f32 references (bf16 MXU inputs, f32 accumulation)
    for i, (x, y) in enumerate(zip(rgb_fs_feat, distill_feature)):
        ref = model.adapt_reference(i, x)
        assert y.shape == ref.shape, (y.shape, ref.shape)
        assert jnp.allclose(y, ref, atol=2e-2, rtol=2e-2), f"adapt layer {i} mismatch"

    # Also exercise the multi-row-tile path explicitly (grid = (N, H//4))
    y_tiled = jax.block_until_ready(model.adapt(0, rgb_fs_feat[0], tile_rows=4))
    ref0 = model.adapt_reference(0, rgb_fs_feat[0])
    assert jnp.allclose(y_tiled, ref0, atol=2e-2, rtol=2e-2), "tiled adapt mismatch"

    # Exercise norm() (gridded sum/sumsq reduction + per-channel FMA pass)
    nrm = jax.block_until_ready(model.norm(rgb_fs_feat[0]))
    nrm_ref = DIDDistillPallas.norm_reference(rgb_fs_feat[0])
    assert jnp.allclose(nrm, nrm_ref, atol=1e-3, rtol=1e-3), "norm mismatch"

    print("KERNEL_OK")
</pallas_src>

<mosaic_0001>
module attributes {stable_mosaic.version = 11 : i64} {
  func.func @_adapt_kernel(%arg0: i32, %arg1: i32, %arg2: memref<1x18x18x16xf32, #tpu.memory_space<vmem>>, %arg3: memref<144x128xbf16, #tpu.memory_space<vmem>>, %arg4: memref<1x128xf32, #tpu.memory_space<vmem>>, %arg5: memref<128x128xbf16, #tpu.memory_space<vmem>>, %arg6: memref<1x128xf32, #tpu.memory_space<vmem>>, %arg7: memref<1x16x16x128xf32, #tpu.memory_space<vmem>>) attributes {dimension_semantics = [#tpu.dimension_semantics<parallel>, #tpu.dimension_semantics<parallel>], iteration_bounds = array<i64: 2, 1>, scalar_prefetch = 0 : i64, scratch_operands = 0 : i64, tpu.core_type = #tpu.core_type<tc>, window_params = [{transform_indices = @transform_0, window_bounds = array<i64: 1, 18, 18, 16>}, {pipeline_mode = #tpu.pipeline_mode<synchronous>, transform_indices = @transform_1, window_bounds = array<i64: 144, 128>}, {pipeline_mode = #tpu.pipeline_mode<synchronous>, transform_indices = @transform_2, window_bounds = array<i64: 1, 128>}, {pipeline_mode = #tpu.pipeline_mode<synchronous>, transform_indices = @transform_3, window_bounds = array<i64: 128, 128>}, {pipeline_mode = #tpu.pipeline_mode<synchronous>, transform_indices = @transform_4, window_bounds = array<i64: 1, 128>}, {transform_indices = @transform_5, window_bounds = array<i64: 1, 16, 16, 128>}]} {
    %c0 = arith.constant 0 : index
    %c0_0 = arith.constant 0 : index
    %c0_1 = arith.constant 0 : index
    %c0_2 = arith.constant 0 : index
    %0 = vector.load %arg2[%c0, %c0_0, %c0_1, %c0_2] : memref<1x18x18x16xf32, #tpu.memory_space<vmem>>, vector<1x18x18x16xf32>
    %1 = vector.shape_cast %0 : vector<1x18x18x16xf32> to vector<18x18x16xf32>
    %2 = vector.extract_strided_slice %1 {offsets = [0, 0, 0], sizes = [16, 16, 16], strides = [1, 1, 1]} : vector<18x18x16xf32> to vector<16x16x16xf32>
    %3 = vector.extract_strided_slice %1 {offsets = [0, 1, 0], sizes = [16, 16, 16], strides = [1, 1, 1]} : vector<18x18x16xf32> to vector<16x16x16xf32>
    %4 = vector.extract_strided_slice %1 {offsets = [0, 2, 0], sizes = [16, 16, 16], strides = [1, 1, 1]} : vector<18x18x16xf32> to vector<16x16x16xf32>
    %5 = vector.extract_strided_slice %1 {offsets = [1, 0, 0], sizes = [16, 16, 16], strides = [1, 1, 1]} : vector<18x18x16xf32> to vector<16x16x16xf32>
    %6 = vector.extract_strided_slice %1 {offsets = [1, 1, 0], sizes = [16, 16, 16], strides = [1, 1, 1]} : vector<18x18x16xf32> to vector<16x16x16xf32>
    %7 = vector.extract_strided_slice %1 {offsets = [1, 2, 0], sizes = [16, 16, 16], strides = [1, 1, 1]} : vector<18x18x16xf32> to vector<16x16x16xf32>
    %8 = vector.extract_strided_slice %1 {offsets = [2, 0, 0], sizes = [16, 16, 16], strides = [1, 1, 1]} : vector<18x18x16xf32> to vector<16x16x16xf32>
    %9 = vector.extract_strided_slice %1 {offsets = [2, 1, 0], sizes = [16, 16, 16], strides = [1, 1, 1]} : vector<18x18x16xf32> to vector<16x16x16xf32>
    %10 = vector.extract_strided_slice %1 {offsets = [2, 2, 0], sizes = [16, 16, 16], strides = [1, 1, 1]} : vector<18x18x16xf32> to vector<16x16x16xf32>
    %11 = tpu.concatenate %2, %3, %4, %5, %6, %7, %8, %9, %10 in 2 : vector<16x16x16xf32>, vector<16x16x16xf32>, vector<16x16x16xf32>, vector<16x16x16xf32>, vector<16x16x16xf32>, vector<16x16x16xf32>, vector<16x16x16xf32>, vector<16x16x16xf32>, vector<16x16x16xf32> -> vector<16x16x144xf32>
    %12 = vector.shape_cast %11 : vector<16x16x144xf32> to vector<256x144xf32>
    %13 = arith.truncf %12 : vector<256x144xf32> to vector<256x144xbf16>
    %c0_3 = arith.constant 0 : index
    %c0_4 = arith.constant 0 : index
    %14 = vector.load %arg3[%c0_3, %c0_4] : memref<144x128xbf16, #tpu.memory_space<vmem>>, vector<144x128xbf16>
    %cst = arith.constant dense<0.000000e+00> : vector<256x128xf32>
    %15 = tpu.matmul %13, %14, %cst {dimension_numbers = #tpu.dot_dimension_numbers<[1], [0], [0], [1], [0, 0, 1, 1], [], []>} : vector<256x144xbf16>, vector<144x128xbf16>, vector<256x128xf32> -> vector<256x128xf32>
    %c0_5 = arith.constant 0 : index
    %c0_6 = arith.constant 0 : index
    %16 = vector.load %arg4[%c0_5, %c0_6] : memref<1x128xf32, #tpu.memory_space<vmem>>, vector<1x128xf32>
    %17 = vector.broadcast %16 : vector<1x128xf32> to vector<256x128xf32>
    %18 = arith.addf %15, %17 : vector<256x128xf32>
    %cst_7 = arith.constant 0.000000e+00 : f32
    %19 = vector.broadcast %cst_7 : f32 to vector<256x128xf32>
    %20 = arith.maximumf %18, %19 : vector<256x128xf32>
    %21 = arith.truncf %20 : vector<256x128xf32> to vector<256x128xbf16>
    %c0_8 = arith.constant 0 : index
    %c0_9 = arith.constant 0 : index
    %22 = vector.load %arg5[%c0_8, %c0_9] : memref<128x128xbf16, #tpu.memory_space<vmem>>, vector<128x128xbf16>
    %cst_10 = arith.constant dense<0.000000e+00> : vector<256x128xf32>
    %23 = tpu.matmul %21, %22, %cst_10 {dimension_numbers = #tpu.dot_dimension_numbers<[1], [0], [0], [1], [0, 0, 1, 1], [], []>} : vector<256x128xbf16>, vector<128x128xbf16>, vector<256x128xf32> -> vector<256x128xf32>
    %c0_11 = arith.constant 0 : index
    %c0_12 = arith.constant 0 : index
    %24 = vector.load %arg6[%c0_11, %c0_12] : memref<1x128xf32, #tpu.memory_space<vmem>>, vector<1x128xf32>
    %25 = vector.broadcast %24 : vector<1x128xf32> to vector<256x128xf32>
    %26 = arith.addf %23, %25 : vector<256x128xf32>
    %27 = vector.shape_cast %26 : vector<256x128xf32> to vector<16x16x128xf32>
    %c0_13 = arith.constant 0 : index
    %c0_14 = arith.constant 0 : index
    %c0_15 = arith.constant 0 : index
    %c0_16 = arith.constant 0 : index
    %28 = vector.load %arg7[%c0_13, %c0_14, %c0_15, %c0_16] : memref<1x16x16x128xf32, #tpu.memory_space<vmem>>, vector<1x16x16x128xf32>
    %29 = vector.shape_cast %28 : vector<1x16x16x128xf32> to vector<16x16x128xf32>
    %30 = vector.shape_cast %27 : vector<16x16x128xf32> to vector<1x16x16x128xf32>
    tpu.vector_store %arg7[%c0_13, %c0_14, %c0_15, %c0_16], %30 {strides = array<i32>} : memref<1x16x16x128xf32, #tpu.memory_space<vmem>>, vector<1x16x16x128xf32>,
    return
  }
  func.func @transform_0(%arg0: i32, %arg1: i32) -> (i32, i32, i32, i32) {
    %c1_i32 = arith.constant 1 : i32
    %0 = arith.muli %arg0, %c1_i32 : i32
    %1 = arith.addi %0, %arg1 : i32
    %c0_i32 = arith.constant 0 : i32
    %c0_i32_0 = arith.constant 0 : i32
    %c0_i32_1 = arith.constant 0 : i32
    %c0_i32_2 = arith.constant 0 : i32
    return %1, %c0_i32, %c0_i32_0, %c0_i32_1 : i32, i32, i32, i32
  }
  func.func @transform_1(%arg0: i32, %arg1: i32) -> (i32, i32) {
    %c0_i32 = arith.constant 0 : i32
    %c0_i32_0 = arith.constant 0 : i32
    %c0_i32_1 = arith.constant 0 : i32
    return %c0_i32, %c0_i32_0 : i32, i32
  }
  func.func @transform_2(%arg0: i32, %arg1: i32) -> (i32, i32) {
    %c0_i32 = arith.constant 0 : i32
    %c0_i32_0 = arith.constant 0 : i32
    %c0_i32_1 = arith.constant 0 : i32
    return %c0_i32, %c0_i32_0 : i32, i32
  }
  func.func @transform_3(%arg0: i32, %arg1: i32) -> (i32, i32) {
    %c0_i32 = arith.constant 0 : i32
    %c0_i32_0 = arith.constant 0 : i32
    %c0_i32_1 = arith.constant 0 : i32
    return %c0_i32, %c0_i32_0 : i32, i32
  }
  func.func @transform_4(%arg0: i32, %arg1: i32) -> (i32, i32) {
    %c0_i32 = arith.constant 0 : i32
    %c0_i32_0 = arith.constant 0 : i32
    %c0_i32_1 = arith.constant 0 : i32
    return %c0_i32, %c0_i32_0 : i32, i32
  }
  func.func @transform_5(%arg0: i32, %arg1: i32) -> (i32, i32, i32, i32) {
    %c0_i32 = arith.constant 0 : i32
    %c0_i32_0 = arith.constant 0 : i32
    %c0_i32_1 = arith.constant 0 : i32
    return %arg0, %arg1, %c0_i32, %c0_i32_0 : i32, i32, i32, i32
  }
}

</mosaic_0001>

<llo_original>
// kernel: adapt_layer_pallas.1
$region0: #{adapt_layer_pallas.1}
  #allocation0 [shape = 'u32[]', space=smem, size = 0x4, offset = 0x4, fixed_abs, tag = 'smem constant byte address 0x4 - core index']
  #allocation1 [shape = 'u32[144,128]{1,0:T(1,128)}', space=vmem, size = 0x12000, scoped, tag = 'internal scratch']
  %s0 = inlined_call_operand.vmem [shape: f32[2,18,18,16], index: 0, kind: input, shape index: {}]
  %s1 = inlined_call_operand.vmem [shape: bf16[144,128], index: 1, kind: input, shape index: {}]
  %s2 = inlined_call_operand.vmem [shape: f32[1,128], index: 2, kind: input, shape index: {}]
  %s3 = inlined_call_operand.vmem [shape: bf16[128,128], index: 3, kind: input, shape index: {}]
  %s4 = inlined_call_operand.vmem [shape: f32[1,128], index: 4, kind: input, shape index: {}]
  %s5 = inlined_call_operand.hbm [shape: f32[2,16,16,128], index: 5, kind: output, shape index: {}]
  %s6 = sld [smem:[#allocation0]]
  $region53: #{adapt_layer_pallas.1} parent=0
    _
  %s8 = ssub.s32 1, %s6
  %s9 = scalar_select 0, %s8, %s6
  $region1: #{adapt_layer_pallas.1} parent=0
    #allocation2 [shape = 'u8[262144]{0}', space=vmem, size = 0x40000, scoped, tag = 'output window, operand 0']
    #allocation3 [shape = 's32[2]{0}', space=sflag, size = 0x8, scoped, tag = 'scoped memory for adapt_layer_pallas.1']
    %10 = vsyncpa [#allocation3], 0
    %s11 = scalar_lea.sflag [#allocation3], 1
    %12 = vsyncpa %s11, 0
    loop: start=0, step=1, limit=4
    $region2: #{adapt_layer_pallas.1} parent=1 // loop_pre_header
      _
    $region3: #{adapt_layer_pallas.1} parent=1 // loop_header
      %s14 = sphi 0, %s18
      %p15 = scmp.ge.s32.totalorder %s14, 4
      %s21 = sphi 0, %s33
      %s22 = sphi 0, %s29
      %s23 = sphi 0, %s21
      %s24 = sphi 0, %s22
      %s25 = sphi 0, %s23
      %s26 = sphi 0, %s24
      %s38 = sphi 0, %s40
      %s41 = sphi 0, %s38
      %s42 = sphi 0, %s41
      %s58 = sphi 0, %s42
      %s62 = sphi 0, %s62
      %s64 = sphi 0, %s62
      %s65 = sphi 0, %s64
      %s79 = sphi 0, %s65
      %s83 = sphi 0, %s83
      %s85 = sphi 0, %s83
      %s86 = sphi 0, %s85
      %s100 = sphi 0, %s86
      %s104 = sphi 0, %s104
      %s106 = sphi 0, %s104
      %s107 = sphi 0, %s106
      %s121 = sphi 0, %s107
      %s125 = sphi 0, %s125
      %s127 = sphi 0, %s125
      %s128 = sphi 0, %s127
      %s142 = sphi 0, %s128
      %s150 = sphi 0, %s152
      %s153 = sphi 0, %s150
      %s154 = sphi 0, %s153
      %s170 = sphi 0, %s154
    $region4: #{adapt_layer_pallas.1} parent=1 // loop_header_branch
      %17 = sbr.rel (%p15) target = $region8
    $region5: #{adapt_layer_pallas.1} parent=1 // loop_body
      %s19 = ssub.s32 %s14, 1
      %s20 = ssub.s32 %s14, 2
      %s27 = sadd.s32 1, %s22
      %p28 = scmp.ge.s32.totalorder %s27, 1
      %s29 = scalar_select %p28, 0, %s27
      %s30 = sadd.s32 1, %s21
      %s31 = scalar_select %p28, %s30, %s21
      %p32 = scmp.ge.s32.totalorder %s31, 2
      %s33 = scalar_select %p32, 0, %s31
      %s34 = sadd.s32 %s21, %s22
      %s35 = sadd.s32 %s33, %s29
      %s36 = ssub.s32 %s34, %s35
      %p37 = scmp.eq.s32.totalorder %s36, 0
      %s39 = sadd.s32 %s38, 1
      %s40 = scalar_select %p37, %s38, %s39
      %p43 = pneg %p37
      %p44 = scmp.eq.s32.totalorder %s14, 1
      %p45 = por %p43, %p44
      %p46 = scmp.ne.s32.totalorder %s38, %s41
      %p47 = scmp.eq.s32.totalorder %s14, 0
      %p48 = por %p46, %p47
      %p49 = scmp.ne.s32.totalorder %s38, %s41
      %p50 = scmp.eq.s32.totalorder %s19, 1
      %p51 = por %p49, %p50
      %p52 = scmp.ne.s32.totalorder %s41, %s42
      %p53 = scmp.eq.s32.totalorder %s19, 0
      %p54 = por %p52, %p53
      %p55 = scmp.ne.s32.totalorder %s41, %s42
      %p56 = scmp.eq.s32.totalorder %s20, 1
      %p57 = por %p55, %p56
      %p59 = scmp.ne.s32.totalorder %s42, %s58
      %p60 = scmp.eq.s32.totalorder %s20, 0
      %p61 = por %p59, %p60
      %s63 = sadd.s32 %s62, 1
      %p66 = scmp.eq.s32.totalorder %s14, 1
      %p67 = scmp.ne.s32.totalorder %s62, %s64
      %p68 = scmp.eq.s32.totalorder %s14, 0
      %p69 = por %p67, %p68
      %p70 = scmp.ne.s32.totalorder %s62, %s64
      %p71 = scmp.eq.s32.totalorder %s19, 1
      %p72 = por %p70, %p71
      %p73 = scmp.ne.s32.totalorder %s64, %s65
      %p74 = scmp.eq.s32.totalorder %s19, 0
      %p75 = por %p73, %p74
      %p76 = scmp.ne.s32.totalorder %s64, %s65
      %p77 = scmp.eq.s32.totalorder %s20, 1
      %p78 = por %p76, %p77
      %p80 = scmp.ne.s32.totalorder %s65, %s79
      %p81 = scmp.eq.s32.totalorder %s20, 0
      %p82 = por %p80, %p81
      %s84 = sadd.s32 %s83, 1
      %p87 = scmp.eq.s32.totalorder %s14, 1
      %p88 = scmp.ne.s32.totalorder %s83, %s85
      %p89 = scmp.eq.s32.totalorder %s14, 0
      %p90 = por %p88, %p89
      %p91 = scmp.ne.s32.totalorder %s83, %s85
      %p92 = scmp.eq.s32.totalorder %s19, 1
      %p93 = por %p91, %p92
      %p94 = scmp.ne.s32.totalorder %s85, %s86
      %p95 = scmp.eq.s32.totalorder %s19, 0
      %p96 = por %p94, %p95
      %p97 = scmp.ne.s32.totalorder %s85, %s86
      %p98 = scmp.eq.s32.totalorder %s20, 1
      %p99 = por %p97, %p98
      %p101 = scmp.ne.s32.totalorder %s86, %s100
      %p102 = scmp.eq.s32.totalorder %s20, 0
      %p103 = por %p101, %p102
      %s105 = sadd.s32 %s104, 1
      %p108 = scmp.eq.s32.totalorder %s14, 1
      %p109 = scmp.ne.s32.totalorder %s104, %s106
      %p110 = scmp.eq.s32.totalorder %s14, 0
      %p111 = por %p109, %p110
      %p112 = scmp.ne.s32.totalorder %s104, %s106
      %p113 = scmp.eq.s32.totalorder %s19, 1
      %p114 = por %p112, %p113
      %p115 = scmp.ne.s32.totalorder %s106, %s107
      %p116 = scmp.eq.s32.totalorder %s19, 0
      %p117 = por %p115, %p116
      %p118 = scmp.ne.s32.totalorder %s106, %s107
      %p119 = scmp.eq.s32.totalorder %s20, 1
      %p120 = por %p118, %p119
      %p122 = scmp.ne.s32.totalorder %s107, %s121
      %p123 = scmp.eq.s32.totalorder %s20, 0
      %p124 = por %p122, %p123
      %s126 = sadd.s32 %s125, 1
      %p129 = scmp.eq.s32.totalorder %s14, 1
      %p130 = scmp.ne.s32.totalorder %s125, %s127
      %p131 = scmp.eq.s32.totalorder %s14, 0
      %p132 = por %p130, %p131
      %p133 = scmp.ne.s32.totalorder %s125, %s127
      %p134 = scmp.eq.s32.totalorder %s19, 1
      %p135 = por %p133, %p134
      %p136 = scmp.ne.s32.totalorder %s127, %s128
      %p137 = scmp.eq.s32.totalorder %s19, 0
      %p138 = por %p136, %p137
      %p139 = scmp.ne.s32.totalorder %s127, %s128
      %p140 = scmp.eq.s32.totalorder %s20, 1
      %p141 = por %p139, %p140
      %p143 = scmp.ne.s32.totalorder %s128, %s142
      %p144 = scmp.eq.s32.totalorder %s20, 0
      %p145 = por %p143, %p144
      %s146 = ssub.s32 %s21, %s33
      %s147 = ssub.s32 %s22, %s29
      %s148 = sor.u32 %s146, %s147
      %p149 = scmp.eq.s32.totalorder %s148, 0
      %s151 = sadd.s32 %s150, 1
      %s152 = scalar_select %p149, %s150, %s151
      %p155 = pneg %p149
      %p156 = scmp.eq.s32.totalorder %s14, 1
      %p157 = por %p155, %p156
      %p158 = scmp.ne.s32.totalorder %s150, %s153
      %p159 = scmp.eq.s32.totalorder %s14, 0
      %p160 = por %p158, %p159
      %p161 = scmp.ne.s32.totalorder %s150, %s153
      %p162 = scmp.eq.s32.totalorder %s19, 1
      %p163 = por %p161, %p162
      %p164 = scmp.ne.s32.totalorder %s153, %s154
      %p165 = scmp.eq.s32.totalorder %s19, 0
      %p166 = por %p164, %p165
      %p167 = scmp.ne.s32.totalorder %s153, %s154
      %p168 = scmp.eq.s32.totalorder %s20, 1
      %p169 = por %p167, %p168
      %p171 = scmp.ne.s32.totalorder %s154, %s170
      %p172 = scmp.eq.s32.totalorder %s20, 0
      %p173 = por %p171, %p172
      %p174 = scmp.le.s32.totalorder 1, %s14
      %p175 = scmp.lt.s32.totalorder %s14, 3
      %p176 = pnand %p174, %p175
      %p177 = pneg %p176
      // Predicated region
      $region9: #{adapt_layer_pallas.1} parent=5 // pred_check
        _
      $region10: #{adapt_layer_pallas.1} parent=5 // pred_check_branch
        %179 = sbr.rel (%p176) target = $region12
      $region11: #{adapt_layer_pallas.1} parent=5 // pred_region
        %s180 = ssub.s32 %s14, 1
        // Predicated region
        $region13: #{adapt_layer_pallas.1} parent=11 // pred_check
          %p181 = pneg %p75
        $region14: #{adapt_layer_pallas.1} parent=11 // pred_check_branch
          %183 = sbr.rel (%p181) target = $region16
        $region15: #{adapt_layer_pallas.1} parent=11 // pred_region
          _
        $region16: #{adapt_layer_pallas.1} parent=11 // pred_fallthru
          _
        // Predicated region
        $region17: #{adapt_layer_pallas.1} parent=11 // pred_check
          %p184 = pneg %p96
        $region18: #{adapt_layer_pallas.1} parent=11 // pred_check_branch
          %186 = sbr.rel (%p184) target = $region20
        $region19: #{adapt_layer_pallas.1} parent=11 // pred_region
          _
        $region20: #{adapt_layer_pallas.1} parent=11 // pred_fallthru
          _
        // Predicated region
        $region21: #{adapt_layer_pallas.1} parent=11 // pred_check
          %p187 = pneg %p117
        $region22: #{adapt_layer_pallas.1} parent=11 // pred_check_branch
          %189 = sbr.rel (%p187) target = $region24
        $region23: #{adapt_layer_pallas.1} parent=11 // pred_region
          _
        $region24: #{adapt_layer_pallas.1} parent=11 // pred_fallthru
          _
        // Predicated region
        $region25: #{adapt_layer_pallas.1} parent=11 // pred_check
          %p190 = pneg %p138
        $region26: #{adapt_layer_pallas.1} parent=11 // pred_check_branch
          %192 = sbr.rel (%p190) target = $region28
        $region27: #{adapt_layer_pallas.1} parent=11 // pred_region
          _
        $region28: #{adapt_layer_pallas.1} parent=11 // pred_fallthru
          _
      $region12: #{adapt_layer_pallas.1} parent=5 // pred_fallthru
        _
      %p193 = scmp.lt.s32.totalorder %s14, 2
      // Predicated region
      $region29: #{adapt_layer_pallas.1} parent=5 // pred_check
        %p194 = pneg %p193
      $region30: #{adapt_layer_pallas.1} parent=5 // pred_check_branch
        %196 = sbr.rel (%p194) target = $region32
      $region31: #{adapt_layer_pallas.1} parent=5 // pred_region
        // Predicated region
        $region33: #{adapt_layer_pallas.1} parent=31 // pred_check
          %p197 = pneg %p48
        $region34: #{adapt_layer_pallas.1} parent=31 // pred_check_branch
          %199 = sbr.rel (%p197) target = $region36
        $region35: #{adapt_layer_pallas.1} parent=31 // pred_region
          %s200 = sadd.s32 %s21, %s22
          %p201 = scmp.lt.s32.totalorder %s200, 1
          %s202 = scalar_select %p201, %s200, 1
          %s203 = smul.addr %s202, 54
          %s204 = smul.addr %s203, 8
          %s205 = scalar_lea.vmem %s0, %s204
          %s206 = sadd.s32 %s21, %s22
        $region36: #{adapt_layer_pallas.1} parent=31 // pred_fallthru
          _
      $region32: #{adapt_layer_pallas.1} parent=5 // pred_fallthru
        _
      %p207 = scmp.le.s32.totalorder 1, %s14
      %p208 = scmp.lt.s32.totalorder %s14, 3
      %p209 = pnand %p207, %p208
      %p210 = pneg %p209
      // Predicated region
      $region37: #{adapt_layer_pallas.1} parent=5 // pred_check
        _
      $region38: #{adapt_layer_pallas.1} parent=5 // pred_check_branch
        %212 = sbr.rel (%p209) target = $region40
      $region39: #{adapt_layer_pallas.1} parent=5 // pred_region
        %s213 = ssub.s32 %s14, 1
        %s214 = sadd.s32 %s23, %s24
        %p215 = scmp.lt.s32.totalorder %s214, 1
        %s216 = scalar_select %p215, %s214, 1
        %s217 = smul.addr %s216, 54
        %s218 = smul.addr %s217, 8
        %s219 = scalar_lea.vmem %s0, %s218
        %p220 = pneg %p54
        %p221 = pneg %p51
        %p222 = pneg %p75
        %p223 = pneg %p72
        %p224 = pneg %p96
        %p225 = pneg %p93
        %p226 = pneg %p117
        %p227 = pneg %p114
        %p228 = pneg %p138
        %p229 = pneg %p135
        %p230 = pneg %p166
        %p231 = pneg %p163
        %s232 = sand.u32 %s153, 1
        %s233 = scalar_lea.sflag [#allocation3], %s232
        %s234 = sand.u32 %s153, 1
        %s235 = smul.addr %s234, 256
        %s236 = scalar_lea.vmem [#allocation2], %s235
        %s237 = sadd.s32 %s23, %s24
        %p238 = scmp.lt.s32.totalorder %s237, 1
        %s239 = scalar_select %p238, %s237, 1
        %s240 = smul.addr %s239, 54
        %s241 = smul.addr %s240, 8
        %s242 = scalar_lea.vmem %s0, %s241
        %s243 = sadd.s32 %s23, %s24
        %s244 = smul.u32 16, %s24
        %v246 = vld [vmem:[%s242] sm:$0xff]
        %v247 = vld [vmem:[%s242 + $0x8] sm:$0xff]
        %v248 = vld [vmem:[%s242 + $0x10] sm:$0x3]
        %v249 = vld [vmem:[%s242 + $0x18] sm:$0xff]
        %v250 = vld [vmem:[%s242 + $0x20] sm:$0xff]
        %v251 = vld [vmem:[%s242 + $0x28] sm:$0x3]
        %v252 = vld [vmem:[%s242 + $0x30] sm:$0xff]
        %v253 = vld [vmem:[%s242 + $0x38] sm:$0xff]
        %v254 = vld [vmem:[%s242 + $0x40] sm:$0x3]
        %v255 = vld [vmem:[%s242 + $0x48] sm:$0xff]
        %v256 = vld [vmem:[%s242 + $0x50] sm:$0xff]
        %v257 = vld [vmem:[%s242 + $0x58] sm:$0x3]
        %v258 = vld [vmem:[%s242 + $0x60] sm:$0xff]
        %v259 = vld [vmem:[%s242 + $0x68] sm:$0xff]
        %v260 = vld [vmem:[%s242 + $0x70] sm:$0x3]
        %v261 = vld [vmem:[%s242 + $0x78] sm:$0xff]
        %v262 = vld [vmem:[%s242 + $0x80] sm:$0xff]
        %v263 = vld [vmem:[%s242 + $0x88] sm:$0x3]
        %v264 = vld [vmem:[%s242 + $0x90] sm:$0xff]
        %v265 = vld [vmem:[%s242 + $0x98] sm:$0xff]
        %v266 = vld [vmem:[%s242 + $0xa0] sm:$0x3]
        %v267 = vld [vmem:[%s242 + $0xa8] sm:$0xff]
        %v268 = vld [vmem:[%s242 + $0xb0] sm:$0xff]
        %v269 = vld [vmem:[%s242 + $0xb8] sm:$0x3]
        %v270 = vld [vmem:[%s242 + $0xc0] sm:$0xff]
        %v271 = vld [vmem:[%s242 + $0xc8] sm:$0xff]
        %v272 = vld [vmem:[%s242 + $0xd0] sm:$0x3]
        %v273 = vld [vmem:[%s242 + $0xd8] sm:$0xff]
        %v274 = vld [vmem:[%s242 + $0xe0] sm:$0xff]
        %v275 = vld [vmem:[%s242 + $0xe8] sm:$0x3]
        %v276 = vld [vmem:[%s242 + $0xf0] sm:$0xff]
        %v277 = vld [vmem:[%s242 + $0xf8] sm:$0xff]
        %v278 = vld [vmem:[%s242 + $0x100] sm:$0x3]
        %v279 = vld [vmem:[%s242 + $0x108] sm:$0xff]
        %v280 = vld [vmem:[%s242 + $0x110] sm:$0xff]
        %v281 = vld [vmem:[%s242 + $0x118] sm:$0x3]
        %v282 = vld [vmem:[%s242 + $0x120] sm:$0xff]
        %v283 = vld [vmem:[%s242 + $0x128] sm:$0xff]
        %v284 = vld [vmem:[%s242 + $0x130] sm:$0x3]
        %v285 = vld [vmem:[%s242 + $0x138] sm:$0xff]
        %v286 = vld [vmem:[%s242 + $0x140] sm:$0xff]
        %v287 = vld [vmem:[%s242 + $0x148] sm:$0x3]
        %v288 = vld [vmem:[%s242 + $0x150] sm:$0xff]
        %v289 = vld [vmem:[%s242 + $0x158] sm:$0xff]
        %v290 = vld [vmem:[%s242 + $0x160] sm:$0x3]
        %v291 = vld [vmem:[%s242 + $0x168] sm:$0xff]
        %v292 = vld [vmem:[%s242 + $0x170] sm:$0xff]
        %v293 = vld [vmem:[%s242 + $0x178] sm:$0x3]
        %v294 = vld [vmem:[%s242 + $0x180] sm:$0xff]
        %v295 = vld [vmem:[%s242 + $0x188] sm:$0xff]
        %v296 = vld [vmem:[%s242 + $0x190] sm:$0x3]
        %v297 = vld [vmem:[%s242 + $0x198] sm:$0xff]
        %v298 = vld [vmem:[%s242 + $0x1a0] sm:$0xff]
        %v299 = vld [vmem:[%s242 + $0x1a8] sm:$0x3]
        %vm348 = vcmask 1046528
        %v349 = vrot.slane %v246, 1
        %v350 = vrot.slane %v247, 1
        %v351 = vsel %vm348, %v349, %v350
        %v352 = vrot.slane %v248, 1
        %v353 = vsel %vm348, %v350, %v352
        %v354 = vrot.slane %v249, 1
        %v355 = vrot.slane %v250, 1
        %v356 = vsel %vm348, %v354, %v355
        %v357 = vrot.slane %v251, 1
        %v358 = vsel %vm348, %v355, %v357
        %v359 = vrot.slane %v252, 1
        %v360 = vrot.slane %v253, 1
        %v361 = vsel %vm348, %v359, %v360
        %v362 = vrot.slane %v254, 1
        %v363 = vsel %vm348, %v360, %v362
        %v364 = vrot.slane %v255, 1
        %v365 = vrot.slane %v256, 1
        %v366 = vsel %vm348, %v364, %v365
        %v367 = vrot.slane %v257, 1
        %v368 = vsel %vm348, %v365, %v367
        %v369 = vrot.slane %v258, 1
        %v370 = vrot.slane %v259, 1
        %v371 = vsel %vm348, %v369, %v370
        %v372 = vrot.slane %v260, 1
        %v373 = vsel %vm348, %v370, %v372
        %v374 = vrot.slane %v261, 1
        %v375 = vrot.slane %v262, 1
        %v376 = vsel %vm348, %v374, %v375
        %v377 = vrot.slane %v263, 1
        %v378 = vsel %vm348, %v375, %v377
        %v379 = vrot.slane %v264, 1
        %v380 = vrot.slane %v265, 1
        %v381 = vsel %vm348, %v379, %v380
        %v382 = vrot.slane %v266, 1
        %v383 = vsel %vm348, %v380, %v382
        %v384 = vrot.slane %v267, 1
        %v385 = vrot.slane %v268, 1
        %v386 = vsel %vm348, %v384, %v385
        %v387 = vrot.slane %v269, 1
        %v388 = vsel %vm348, %v385, %v387
        %v389 = vrot.slane %v270, 1
        %v390 = vrot.slane %v271, 1
        %v391 = vsel %vm348, %v389, %v390
        %v392 = vrot.slane %v272, 1
        %v393 = vsel %vm348, %v390, %v392
        %v394 = vrot.slane %v273, 1
        %v395 = vrot.slane %v274, 1
        %v396 = vsel %vm348, %v394, %v395
        %v397 = vrot.slane %v275, 1
        %v398 = vsel %vm348, %v395, %v397
        %v399 = vrot.slane %v276, 1
        %v400 = vrot.slane %v277, 1
        %v401 = vsel %vm348, %v399, %v400
        %v402 = vrot.slane %v278, 1
        %v403 = vsel %vm348, %v400, %v402
        %v404 = vrot.slane %v279, 1
        %v405 = vrot.slane %v280, 1
        %v406 = vsel %vm348, %v404, %v405
        %v407 = vrot.slane %v281, 1
        %v408 = vsel %vm348, %v405, %v407
        %v409 = vrot.slane %v282, 1
        %v410 = vrot.slane %v283, 1
        %v411 = vsel %vm348, %v409, %v410
        %v412 = vrot.slane %v284, 1
        %v413 = vsel %vm348, %v410, %v412
        %v414 = vrot.slane %v285, 1
        %v415 = vrot.slane %v286, 1
        %v416 = vsel %vm348, %v414, %v415
        %v417 = vrot.slane %v287, 1
        %v418 = vsel %vm348, %v415, %v417
        %v419 = vrot.slane %v288, 1
        %v420 = vrot.slane %v289, 1
        %v421 = vsel %vm348, %v419, %v420
        %v422 = vrot.slane %v290, 1
        %v423 = vsel %vm348, %v420, %v422
        %v424 = vrot.slane %v291, 1
        %v425 = vrot.slane %v292, 1
        %v426 = vsel %vm348, %v424, %v425
        %v427 = vrot.slane %v293, 1
        %v428 = vsel %vm348, %v425, %v427
        %429 = vrot.lane.b32.xlu0 %v351, 16
        %v430 = vpop.permute.xlu0 %429
        %431 = vrot.lane.b32.xlu0 %v353, 16
        %v432 = vpop.permute.xlu0 %431
        %433 = vrot.lane.b32.xlu0 %v356, 16
        %v434 = vpop.permute.xlu0 %433
        %435 = vrot.lane.b32.xlu0 %v358, 16
        %v436 = vpop.permute.xlu0 %435
        %437 = vrot.lane.b32.xlu0 %v361, 16
        %v438 = vpop.permute.xlu0 %437
        %439 = vrot.lane.b32.xlu0 %v363, 16
        %v440 = vpop.permute.xlu0 %439
        %441 = vrot.lane.b32.xlu0 %v366, 16
        %v442 = vpop.permute.xlu0 %441
        %443 = vrot.lane.b32.xlu0 %v368, 16
        %v444 = vpop.permute.xlu0 %443
        %445 = vrot.lane.b32.xlu0 %v371, 16
        %v446 = vpop.permute.xlu0 %445
        %447 = vrot.lane.b32.xlu0 %v373, 16
        %v448 = vpop.permute.xlu0 %447
        %449 = vrot.lane.b32.xlu0 %v376, 16
        %v450 = vpop.permute.xlu0 %449
        %451 = vrot.lane.b32.xlu0 %v378, 16
        %v452 = vpop.permute.xlu0 %451
        %453 = vrot.lane.b32.xlu0 %v381, 16
        %v454 = vpop.permute.xlu0 %453
        %455 = vrot.lane.b32.xlu0 %v383, 16
        %v456 = vpop.permute.xlu0 %455
        %457 = vrot.lane.b32.xlu0 %v386, 16
        %v458 = vpop.permute.xlu0 %457
        %459 = vrot.lane.b32.xlu0 %v388, 16
        %v460 = vpop.permute.xlu0 %459
        %461 = vrot.lane.b32.xlu0 %v391, 16
        %v462 = vpop.permute.xlu0 %461
        %463 = vrot.lane.b32.xlu0 %v393, 16
        %v464 = vpop.permute.xlu0 %463
        %465 = vrot.lane.b32.xlu0 %v396, 16
        %v466 = vpop.permute.xlu0 %465
        %467 = vrot.lane.b32.xlu0 %v398, 16
        %v468 = vpop.permute.xlu0 %467
        %469 = vrot.lane.b32.xlu0 %v401, 16
        %v470 = vpop.permute.xlu0 %469
        %471 = vrot.lane.b32.xlu0 %v403, 16
        %v472 = vpop.permute.xlu0 %471
        %473 = vrot.lane.b32.xlu0 %v406, 16
        %v474 = vpop.permute.xlu0 %473
        %475 = vrot.lane.b32.xlu0 %v408, 16
        %v476 = vpop.permute.xlu0 %475
        %477 = vrot.lane.b32.xlu0 %v411, 16
        %v478 = vpop.permute.xlu0 %477
        %479 = vrot.lane.b32.xlu0 %v413, 16
        %v480 = vpop.permute.xlu0 %479
        %481 = vrot.lane.b32.xlu0 %v416, 16
        %v482 = vpop.permute.xlu0 %481
        %483 = vrot.lane.b32.xlu0 %v418, 16
        %v484 = vpop.permute.xlu0 %483
        %485 = vrot.lane.b32.xlu0 %v421, 16
        %v486 = vpop.permute.xlu0 %485
        %487 = vrot.lane.b32.xlu0 %v423, 16
        %v488 = vpop.permute.xlu0 %487
        %489 = vrot.lane.b32.xlu0 %v426, 16
        %v490 = vpop.permute.xlu0 %489
        %491 = vrot.lane.b32.xlu0 %v428, 16
        %v492 = vpop.permute.xlu0 %491
        %vm525 = vcmask 1045504
        %v526 = vrot.slane %v246, 2
        %v527 = vrot.slane %v247, 2
        %v528 = vsel %vm525, %v526, %v527
        %v529 = vrot.slane %v248, 2
        %v530 = vsel %vm525, %v527, %v529
        %v531 = vrot.slane %v249, 2
        %v532 = vrot.slane %v250, 2
        %v533 = vsel %vm525, %v531, %v532
        %v534 = vrot.slane %v251, 2
        %v535 = vsel %vm525, %v532, %v534
        %v536 = vrot.slane %v252, 2
        %v537 = vrot.slane %v253, 2
        %v538 = vsel %vm525, %v536, %v537
        %v539 = vrot.slane %v254, 2
        %v540 = vsel %vm525, %v537, %v539
        %v541 = vrot.slane %v255, 2
        %v542 = vrot.slane %v256, 2
        %v543 = vsel %vm525, %v541, %v542
        %v544 = vrot.slane %v257, 2
        %v545 = vsel %vm525, %v542, %v544
        %v546 = vrot.slane %v258, 2
        %v547 = vrot.slane %v259, 2
        %v548 = vsel %vm525, %v546, %v547
        %v549 = vrot.slane %v260, 2
        %v550 = vsel %vm525, %v547, %v549
        %v551 = vrot.slane %v261, 2
        %v552 = vrot.slane %v262, 2
        %v553 = vsel %vm525, %v551, %v552
        %v554 = vrot.slane %v263, 2
        %v555 = vsel %vm525, %v552, %v554
        %v556 = vrot.slane %v264, 2
        %v557 = vrot.slane %v265, 2
        %v558 = vsel %vm525, %v556, %v557
        %v559 = vrot.slane %v266, 2
        %v560 = vsel %vm525, %v557, %v559
        %v561 = vrot.slane %v267, 2
        %v562 = vrot.slane %v268, 2
        %v563 = vsel %vm525, %v561, %v562
        %v564 = vrot.slane %v269, 2
        %v565 = vsel %vm525, %v562, %v564
        %v566 = vrot.slane %v270, 2
        %v567 = vrot.slane %v271, 2
        %v568 = vsel %vm525, %v566, %v567
        %v569 = vrot.slane %v272, 2
        %v570 = vsel %vm525, %v567, %v569
        %v571 = vrot.slane %v273, 2
        %v572 = vrot.slane %v274, 2
        %v573 = vsel %vm525, %v571, %v572
        %v574 = vrot.slane %v275, 2
        %v575 = vsel %vm525, %v572, %v574
        %v576 = vrot.slane %v276, 2
        %v577 = vrot.slane %v277, 2
        %v578 = vsel %vm525, %v576, %v577
        %v579 = vrot.slane %v278, 2
        %v580 = vsel %vm525, %v577, %v579
        %v581 = vrot.slane %v279, 2
        %v582 = vrot.slane %v280, 2
        %v583 = vsel %vm525, %v581, %v582
        %v584 = vrot.slane %v281, 2
        %v585 = vsel %vm525, %v582, %v584
        %v586 = vrot.slane %v282, 2
        %v587 = vrot.slane %v283, 2
        %v588 = vsel %vm525, %v586, %v587
        %v589 = vrot.slane %v284, 2
        %v590 = vsel %vm525, %v587, %v589
        %v591 = vrot.slane %v285, 2
        %v592 = vrot.slane %v286, 2
        %v593 = vsel %vm525, %v591, %v592
        %v594 = vrot.slane %v287, 2
        %v595 = vsel %vm525, %v592, %v594
        %v596 = vrot.slane %v288, 2
        %v597 = vrot.slane %v289, 2
        %v598 = vsel %vm525, %v596, %v597
        %v599 = vrot.slane %v290, 2
        %v600 = vsel %vm525, %v597, %v599
        %v601 = vrot.slane %v291, 2
        %v602 = vrot.slane %v292, 2
        %v603 = vsel %vm525, %v601, %v602
        %v604 = vrot.slane %v293, 2
        %v605 = vsel %vm525, %v602, %v604
        %606 = vrot.lane.b32.xlu0 %v528, 32
        %v607 = vpop.permute.xlu0 %606
        %608 = vrot.lane.b32.xlu0 %v530, 32
        %v609 = vpop.permute.xlu0 %608
        %610 = vrot.lane.b32.xlu0 %v533, 32
        %v611 = vpop.permute.xlu0 %610
        %612 = vrot.lane.b32.xlu0 %v535, 32
        %v613 = vpop.permute.xlu0 %612
        %614 = vrot.lane.b32.xlu0 %v538, 32
        %v615 = vpop.permute.xlu0 %614
        %616 = vrot.lane.b32.xlu0 %v540, 32
        %v617 = vpop.permute.xlu0 %616
        %618 = vrot.lane.b32.xlu0 %v543, 32
        %v619 = vpop.permute.xlu0 %618
        %620 = vrot.lane.b32.xlu0 %v545, 32
        %v621 = vpop.permute.xlu0 %620
        %622 = vrot.lane.b32.xlu0 %v548, 32
        %v623 = vpop.permute.xlu0 %622
        %624 = vrot.lane.b32.xlu0 %v550, 32
        %v625 = vpop.permute.xlu0 %624
        %626 = vrot.lane.b32.xlu0 %v553, 32
        %v627 = vpop.permute.xlu0 %626
        %628 = vrot.lane.b32.xlu0 %v555, 32
        %v629 = vpop.permute.xlu0 %628
        %630 = vrot.lane.b32.xlu0 %v558, 32
        %v631 = vpop.permute.xlu0 %630
        %632 = vrot.lane.b32.xlu0 %v560, 32
        %v633 = vpop.permute.xlu0 %632
        %634 = vrot.lane.b32.xlu0 %v563, 32
        %v635 = vpop.permute.xlu0 %634
        %636 = vrot.lane.b32.xlu0 %v565, 32
        %v637 = vpop.permute.xlu0 %636
        %638 = vrot.lane.b32.xlu0 %v568, 32
        %v639 = vpop.permute.xlu0 %638
        %640 = vrot.lane.b32.xlu0 %v570, 32
        %v641 = vpop.permute.xlu0 %640
        %642 = vrot.lane.b32.xlu0 %v573, 32
        %v643 = vpop.permute.xlu0 %642
        %644 = vrot.lane.b32.xlu0 %v575, 32
        %v645 = vpop.permute.xlu0 %644
        %646 = vrot.lane.b32.xlu0 %v578, 32
        %v647 = vpop.permute.xlu0 %646
        %648 = vrot.lane.b32.xlu0 %v580, 32
        %v649 = vpop.permute.xlu0 %648
        %650 = vrot.lane.b32.xlu0 %v583, 32
        %v651 = vpop.permute.xlu0 %650
        %652 = vrot.lane.b32.xlu0 %v585, 32
        %v653 = vpop.permute.xlu0 %652
        %654 = vrot.lane.b32.xlu0 %v588, 32
        %v655 = vpop.permute.xlu0 %654
        %656 = vrot.lane.b32.xlu0 %v590, 32
        %v657 = vpop.permute.xlu0 %656
        %658 = vrot.lane.b32.xlu0 %v593, 32
        %v659 = vpop.permute.xlu0 %658
        %660 = vrot.lane.b32.xlu0 %v595, 32
        %v661 = vpop.permute.xlu0 %660
        %662 = vrot.lane.b32.xlu0 %v598, 32
        %v663 = vpop.permute.xlu0 %662
        %664 = vrot.lane.b32.xlu0 %v600, 32
        %v665 = vpop.permute.xlu0 %664
        %666 = vrot.lane.b32.xlu0 %v603, 32
        %v667 = vpop.permute.xlu0 %666
        %668 = vrot.lane.b32.xlu0 %v605, 32
        %v669 = vpop.permute.xlu0 %668
        %704 = vrot.lane.b32.xlu0 %v249, 48
        %v705 = vpop.permute.xlu0 %704
        %706 = vrot.lane.b32.xlu0 %v250, 48
        %v707 = vpop.permute.xlu0 %706
        %708 = vrot.lane.b32.xlu0 %v252, 48
        %v709 = vpop.permute.xlu0 %708
        %710 = vrot.lane.b32.xlu0 %v253, 48
        %v711 = vpop.permute.xlu0 %710
        %712 = vrot.lane.b32.xlu0 %v255, 48
        %v713 = vpop.permute.xlu0 %712
        %714 = vrot.lane.b32.xlu0 %v256, 48
        %v715 = vpop.permute.xlu0 %714
        %716 = vrot.lane.b32.xlu0 %v258, 48
        %v717 = vpop.permute.xlu0 %716
        %718 = vrot.lane.b32.xlu0 %v259, 48
        %v719 = vpop.permute.xlu0 %718
        %720 = vrot.lane.b32.xlu0 %v261, 48
        %v721 = vpop.permute.xlu0 %720
        %722 = vrot.lane.b32.xlu0 %v262, 48
        %v723 = vpop.permute.xlu0 %722
        %724 = vrot.lane.b32.xlu0 %v264, 48
        %v725 = vpop.permute.xlu0 %724
        %726 = vrot.lane.b32.xlu0 %v265, 48
        %v727 = vpop.permute.xlu0 %726
        %728 = vrot.lane.b32.xlu0 %v267, 48
        %v729 = vpop.permute.xlu0 %728
        %730 = vrot.lane.b32.xlu0 %v268, 48
        %v731 = vpop.permute.xlu0 %730
        %732 = vrot.lane.b32.xlu0 %v270, 48
        %v733 = vpop.permute.xlu0 %732
        %734 = vrot.lane.b32.xlu0 %v271, 48
        %v735 = vpop.permute.xlu0 %734
        %736 = vrot.lane.b32.xlu0 %v273, 48
        %v737 = vpop.permute.xlu0 %736
        %738 = vrot.lane.b32.xlu0 %v274, 48
        %v739 = vpop.permute.xlu0 %738
        %740 = vrot.lane.b32.xlu0 %v276, 48
        %v741 = vpop.permute.xlu0 %740
        %742 = vrot.lane.b32.xlu0 %v277, 48
        %v743 = vpop.permute.xlu0 %742
        %744 = vrot.lane.b32.xlu0 %v279, 48
        %v745 = vpop.permute.xlu0 %744
        %746 = vrot.lane.b32.xlu0 %v280, 48
        %v747 = vpop.permute.xlu0 %746
        %748 = vrot.lane.b32.xlu0 %v282, 48
        %v749 = vpop.permute.xlu0 %748
        %750 = vrot.lane.b32.xlu0 %v283, 48
        %v751 = vpop.permute.xlu0 %750
        %752 = vrot.lane.b32.xlu0 %v285, 48
        %v753 = vpop.permute.xlu0 %752
        %754 = vrot.lane.b32.xlu0 %v286, 48
        %v755 = vpop.permute.xlu0 %754
        %756 = vrot.lane.b32.xlu0 %v288, 48
        %v757 = vpop.permute.xlu0 %756
        %758 = vrot.lane.b32.xlu0 %v289, 48
        %v759 = vpop.permute.xlu0 %758
        %760 = vrot.lane.b32.xlu0 %v291, 48
        %v761 = vpop.permute.xlu0 %760
        %762 = vrot.lane.b32.xlu0 %v292, 48
        %v763 = vpop.permute.xlu0 %762
        %764 = vrot.lane.b32.xlu0 %v294, 48
        %v765 = vpop.permute.xlu0 %764
        %766 = vrot.lane.b32.xlu0 %v295, 48
        %v767 = vpop.permute.xlu0 %766
        %v801 = vrot.slane %v294, 1
        %v802 = vrot.slane %v295, 1
        %v803 = vsel %vm348, %v801, %v802
        %v804 = vrot.slane %v296, 1
        %v805 = vsel %vm348, %v802, %v804
        %806 = vrot.lane.b32.xlu0 %v356, 64
        %v807 = vpop.permute.xlu0 %806
        %808 = vrot.lane.b32.xlu0 %v358, 64
        %v809 = vpop.permute.xlu0 %808
        %810 = vrot.lane.b32.xlu0 %v361, 64
        %v811 = vpop.permute.xlu0 %810
        %812 = vrot.lane.b32.xlu0 %v363, 64
        %v813 = vpop.permute.xlu0 %812
        %814 = vrot.lane.b32.xlu0 %v366, 64
        %v815 = vpop.permute.xlu0 %814
        %816 = vrot.lane.b32.xlu0 %v368, 64
        %v817 = vpop.permute.xlu0 %816
        %818 = vrot.lane.b32.xlu0 %v371, 64
        %v819 = vpop.permute.xlu0 %818
        %820 = vrot.lane.b32.xlu0 %v373, 64
        %v821 = vpop.permute.xlu0 %820
        %822 = vrot.lane.b32.xlu0 %v376, 64
        %v823 = vpop.permute.xlu0 %822
        %824 = vrot.lane.b32.xlu0 %v378, 64
        %v825 = vpop.permute.xlu0 %824
        %826 = vrot.lane.b32.xlu0 %v381, 64
        %v827 = vpop.permute.xlu0 %826
        %828 = vrot.lane.b32.xlu0 %v383, 64
        %v829 = vpop.permute.xlu0 %828
        %830 = vrot.lane.b32.xlu0 %v386, 64
        %v831 = vpop.permute.xlu0 %830
        %832 = vrot.lane.b32.xlu0 %v388, 64
        %v833 = vpop.permute.xlu0 %832
        %834 = vrot.lane.b32.xlu0 %v391, 64
        %v835 = vpop.permute.xlu0 %834
        %836 = vrot.lane.b32.xlu0 %v393, 64
        %v837 = vpop.permute.xlu0 %836
        %838 = vrot.lane.b32.xlu0 %v396, 64
        %v839 = vpop.permute.xlu0 %838
        %840 = vrot.lane.b32.xlu0 %v398, 64
        %v841 = vpop.permute.xlu0 %840
        %842 = vrot.lane.b32.xlu0 %v401, 64
        %v843 = vpop.permute.xlu0 %842
        %844 = vrot.lane.b32.xlu0 %v403, 64
        %v845 = vpop.permute.xlu0 %844
        %846 = vrot.lane.b32.xlu0 %v406, 64
        %v847 = vpop.permute.xlu0 %846
        %848 = vrot.lane.b32.xlu0 %v408, 64
        %v849 = vpop.permute.xlu0 %848
        %850 = vrot.lane.b32.xlu0 %v411, 64
        %v851 = vpop.permute.xlu0 %850
        %852 = vrot.lane.b32.xlu0 %v413, 64
        %v853 = vpop.permute.xlu0 %852
        %854 = vrot.lane.b32.xlu0 %v416, 64
        %v855 = vpop.permute.xlu0 %854
        %856 = vrot.lane.b32.xlu0 %v418, 64
        %v857 = vpop.permute.xlu0 %856
        %858 = vrot.lane.b32.xlu0 %v421, 64
        %v859 = vpop.permute.xlu0 %858
        %860 = vrot.lane.b32.xlu0 %v423, 64
        %v861 = vpop.permute.xlu0 %860
        %862 = vrot.lane.b32.xlu0 %v426, 64
        %v863 = vpop.permute.xlu0 %862
        %864 = vrot.lane.b32.xlu0 %v428, 64
        %v865 = vpop.permute.xlu0 %864
        %866 = vrot.lane.b32.xlu0 %v803, 64
        %v867 = vpop.permute.xlu0 %866
        %868 = vrot.lane.b32.xlu0 %v805, 64
        %v869 = vpop.permute.xlu0 %868
        %v902 = vrot.slane %v294, 2
        %v903 = vrot.slane %v295, 2
        %v904 = vsel %vm525, %v902, %v903
        %v905 = vrot.slane %v296, 2
        %v906 = vsel %vm525, %v903, %v905
        %907 = vrot.lane.b32.xlu0 %v533, 80
        %v908 = vpop.permute.xlu0 %907
        %909 = vrot.lane.b32.xlu0 %v535, 80
        %v910 = vpop.permute.xlu0 %909
        %911 = vrot.lane.b32.xlu0 %v538, 80
        %v912 = vpop.permute.xlu0 %911
        %913 = vrot.lane.b32.xlu0 %v540, 80
        %v914 = vpop.permute.xlu0 %913
        %915 = vrot.lane.b32.xlu0 %v543, 80
        %v916 = vpop.permute.xlu0 %915
        %917 = vrot.lane.b32.xlu0 %v545, 80
        %v918 = vpop.permute.xlu0 %917
        %919 = vrot.lane.b32.xlu0 %v548, 80
        %v920 = vpop.permute.xlu0 %919
        %921 = vrot.lane.b32.xlu0 %v550, 80
        %v922 = vpop.permute.xlu0 %921
        %923 = vrot.lane.b32.xlu0 %v553, 80
        %v924 = vpop.permute.xlu0 %923
        %925 = vrot.lane.b32.xlu0 %v555, 80
        %v926 = vpop.permute.xlu0 %925
        %927 = vrot.lane.b32.xlu0 %v558, 80
        %v928 = vpop.permute.xlu0 %927
        %929 = vrot.lane.b32.xlu0 %v560, 80
        %v930 = vpop.permute.xlu0 %929
        %931 = vrot.lane.b32.xlu0 %v563, 80
        %v932 = vpop.permute.xlu0 %931
        %933 = vrot.lane.b32.xlu0 %v565, 80
        %v934 = vpop.permute.xlu0 %933
        %935 = vrot.lane.b32.xlu0 %v568, 80
        %v936 = vpop.permute.xlu0 %935
        %937 = vrot.lane.b32.xlu0 %v570, 80
        %v938 = vpop.permute.xlu0 %937
        %939 = vrot.lane.b32.xlu0 %v573, 80
        %v940 = vpop.permute.xlu0 %939
        %941 = vrot.lane.b32.xlu0 %v575, 80
        %v942 = vpop.permute.xlu0 %941
        %943 = vrot.lane.b32.xlu0 %v578, 80
        %v944 = vpop.permute.xlu0 %943
        %945 = vrot.lane.b32.xlu0 %v580, 80
        %v946 = vpop.permute.xlu0 %945
        %947 = vrot.lane.b32.xlu0 %v583, 80
        %v948 = vpop.permute.xlu0 %947
        %949 = vrot.lane.b32.xlu0 %v585, 80
        %v950 = vpop.permute.xlu0 %949
        %951 = vrot.lane.b32.xlu0 %v588, 80
        %v952 = vpop.permute.xlu0 %951
        %953 = vrot.lane.b32.xlu0 %v590, 80
        %v954 = vpop.permute.xlu0 %953
        %955 = vrot.lane.b32.xlu0 %v593, 80
        %v956 = vpop.permute.xlu0 %955
        %957 = vrot.lane.b32.xlu0 %v595, 80
        %v958 = vpop.permute.xlu0 %957
        %959 = vrot.lane.b32.xlu0 %v598, 80
        %v960 = vpop.permute.xlu0 %959
        %961 = vrot.lane.b32.xlu0 %v600, 80
        %v962 = vpop.permute.xlu0 %961
        %963 = vrot.lane.b32.xlu0 %v603, 80
        %v964 = vpop.permute.xlu0 %963
        %965 = vrot.lane.b32.xlu0 %v605, 80
        %v966 = vpop.permute.xlu0 %965
        %967 = vrot.lane.b32.xlu0 %v904, 80
        %v968 = vpop.permute.xlu0 %967
        %969 = vrot.lane.b32.xlu0 %v906, 80
        %v970 = vpop.permute.xlu0 %969
        %1005 = vrot.lane.b32.xlu0 %v252, 96
        %v1006 = vpop.permute.xlu0 %1005
        %1007 = vrot.lane.b32.xlu0 %v253, 96
        %v1008 = vpop.permute.xlu0 %1007
        %1009 = vrot.lane.b32.xlu0 %v255, 96
        %v1010 = vpop.permute.xlu0 %1009
        %1011 = vrot.lane.b32.xlu0 %v256, 96
        %v1012 = vpop.permute.xlu0 %1011
        %1013 = vrot.lane.b32.xlu0 %v258, 96
        %v1014 = vpop.permute.xlu0 %1013
        %1015 = vrot.lane.b32.xlu0 %v259, 96
        %v1016 = vpop.permute.xlu0 %1015
        %1017 = vrot.lane.b32.xlu0 %v261, 96
        %v1018 = vpop.permute.xlu0 %1017
        %1019 = vrot.lane.b32.xlu0 %v262, 96
        %v1020 = vpop.permute.xlu0 %1019
        %1021 = vrot.lane.b32.xlu0 %v264, 96
        %v1022 = vpop.permute.xlu0 %1021
        %1023 = vrot.lane.b32.xlu0 %v265, 96
        %v1024 = vpop.permute.xlu0 %1023
        %1025 = vrot.lane.b32.xlu0 %v267, 96
        %v1026 = vpop.permute.xlu0 %1025
        %1027 = vrot.lane.b32.xlu0 %v268, 96
        %v1028 = vpop.permute.xlu0 %1027
        %1029 = vrot.lane.b32.xlu0 %v270, 96
        %v1030 = vpop.permute.xlu0 %1029
        %1031 = vrot.lane.b32.xlu0 %v271, 96
        %v1032 = vpop.permute.xlu0 %1031
        %1033 = vrot.lane.b32.xlu0 %v273, 96
        %v1034 = vpop.permute.xlu0 %1033
        %1035 = vrot.lane.b32.xlu0 %v274, 96
        %v1036 = vpop.permute.xlu0 %1035
        %1037 = vrot.lane.b32.xlu0 %v276, 96
        %v1038 = vpop.permute.xlu0 %1037
        %1039 = vrot.lane.b32.xlu0 %v277, 96
        %v1040 = vpop.permute.xlu0 %1039
        %1041 = vrot.lane.b32.xlu0 %v279, 96
        %v1042 = vpop.permute.xlu0 %1041
        %1043 = vrot.lane.b32.xlu0 %v280, 96
        %v1044 = vpop.permute.xlu0 %1043
        %1045 = vrot.lane.b32.xlu0 %v282, 96
        %v1046 = vpop.permute.xlu0 %1045
        %1047 = vrot.lane.b32.xlu0 %v283, 96
        %v1048 = vpop.permute.xlu0 %1047
        %1049 = vrot.lane.b32.xlu0 %v285, 96
        %v1050 = vpop.permute.xlu0 %1049
        %1051 = vrot.lane.b32.xlu0 %v286, 96
        %v1052 = vpop.permute.xlu0 %1051
        %1053 = vrot.lane.b32.xlu0 %v288, 96
        %v1054 = vpop.permute.xlu0 %1053
        %1055 = vrot.lane.b32.xlu0 %v289, 96
        %v1056 = vpop.permute.xlu0 %1055
        %1057 = vrot.lane.b32.xlu0 %v291, 96
        %v1058 = vpop.permute.xlu0 %1057
        %1059 = vrot.lane.b32.xlu0 %v292, 96
        %v1060 = vpop.permute.xlu0 %1059
        %1061 = vrot.lane.b32.xlu0 %v294, 96
        %v1062 = vpop.permute.xlu0 %1061
        %1063 = vrot.lane.b32.xlu0 %v295, 96
        %v1064 = vpop.permute.xlu0 %1063
        %1065 = vrot.lane.b32.xlu0 %v297, 96
        %v1066 = vpop.permute.xlu0 %1065
        %1067 = vrot.lane.b32.xlu0 %v298, 96
        %v1068 = vpop.permute.xlu0 %1067
        %v1102 = vrot.slane %v297, 1
        %v1103 = vrot.slane %v298, 1
        %v1104 = vsel %vm348, %v1102, %v1103
        %v1105 = vrot.slane %v299, 1
        %v1106 = vsel %vm348, %v1103, %v1105
        %1107 = vrot.lane.b32.xlu0 %v361, 112
        %v1108 = vpop.permute.xlu0 %1107
        %1109 = vrot.lane.b32.xlu0 %v363, 112
        %v1110 = vpop.permute.xlu0 %1109
        %1111 = vrot.lane.b32.xlu0 %v366, 112
        %v1112 = vpop.permute.xlu0 %1111
        %1113 = vrot.lane.b32.xlu0 %v368, 112
        %v1114 = vpop.permute.xlu0 %1113
        %1115 = vrot.lane.b32.xlu0 %v371, 112
        %v1116 = vpop.permute.xlu0 %1115
        %1117 = vrot.lane.b32.xlu0 %v373, 112
        %v1118 = vpop.permute.xlu0 %1117
        %1119 = vrot.lane.b32.xlu0 %v376, 112
        %v1120 = vpop.permute.xlu0 %1119
        %1121 = vrot.lane.b32.xlu0 %v378, 112
        %v1122 = vpop.permute.xlu0 %1121
        %1123 = vrot.lane.b32.xlu0 %v381, 112
        %v1124 = vpop.permute.xlu0 %1123
        %1125 = vrot.lane.b32.xlu0 %v383, 112
        %v1126 = vpop.permute.xlu0 %1125
        %1127 = vrot.lane.b32.xlu0 %v386, 112
        %v1128 = vpop.permute.xlu0 %1127
        %1129 = vrot.lane.b32.xlu0 %v388, 112
        %v1130 = vpop.permute.xlu0 %1129
        %1131 = vrot.lane.b32.xlu0 %v391, 112
        %v1132 = vpop.permute.xlu0 %1131
        %1133 = vrot.lane.b32.xlu0 %v393, 112
        %v1134 = vpop.permute.xlu0 %1133
        %1135 = vrot.lane.b32.xlu0 %v396, 112
        %v1136 = vpop.permute.xlu0 %1135
        %1137 = vrot.lane.b32.xlu0 %v398, 112
        %v1138 = vpop.permute.xlu0 %1137
        %1139 = vrot.lane.b32.xlu0 %v401, 112
        %v1140 = vpop.permute.xlu0 %1139
        %1141 = vrot.lane.b32.xlu0 %v403, 112
        %v1142 = vpop.permute.xlu0 %1141
        %1143 = vrot.lane.b32.xlu0 %v406, 112
        %v1144 = vpop.permute.xlu0 %1143
        %1145 = vrot.lane.b32.xlu0 %v408, 112
        %v1146 = vpop.permute.xlu0 %1145
        %1147 = vrot.lane.b32.xlu0 %v411, 112
        %v1148 = vpop.permute.xlu0 %1147
        %1149 = vrot.lane.b32.xlu0 %v413, 112
        %v1150 = vpop.permute.xlu0 %1149
        %1151 = vrot.lane.b32.xlu0 %v416, 112
        %v1152 = vpop.permute.xlu0 %1151
        %1153 = vrot.lane.b32.xlu0 %v418, 112
        %v1154 = vpop.permute.xlu0 %1153
        %1155 = vrot.lane.b32.xlu0 %v421, 112
        %v1156 = vpop.permute.xlu0 %1155
        %1157 = vrot.lane.b32.xlu0 %v423, 112
        %v1158 = vpop.permute.xlu0 %1157
        %1159 = vrot.lane.b32.xlu0 %v426, 112
        %v1160 = vpop.permute.xlu0 %1159
        %1161 = vrot.lane.b32.xlu0 %v428, 112
        %v1162 = vpop.permute.xlu0 %1161
        %1163 = vrot.lane.b32.xlu0 %v803, 112
        %v1164 = vpop.permute.xlu0 %1163
        %1165 = vrot.lane.b32.xlu0 %v805, 112
        %v1166 = vpop.permute.xlu0 %1165
        %1167 = vrot.lane.b32.xlu0 %v1104, 112
        %v1168 = vpop.permute.xlu0 %1167
        %1169 = vrot.lane.b32.xlu0 %v1106, 112
        %v1170 = vpop.permute.xlu0 %1169
        %v1203 = vrot.slane %v297, 2
        %v1204 = vrot.slane %v298, 2
        %v1205 = vsel %vm525, %v1203, %v1204
        %v1206 = vrot.slane %v299, 2
        %v1207 = vsel %vm525, %v1204, %v1206
        %vm1240 = vcmask 130048
        %v1241 = vsel %vm1240, %v246, %v430
        %v1242 = vsel %vm1240, %v247, %v432
        %v1243 = vsel %vm1240, %v249, %v434
        %v1244 = vsel %vm1240, %v250, %v436
        %v1245 = vsel %vm1240, %v252, %v438
        %v1246 = vsel %vm1240, %v253, %v440
        %v1247 = vsel %vm1240, %v255, %v442
        %v1248 = vsel %vm1240, %v256, %v444
        %v1249 = vsel %vm1240, %v258, %v446
        %v1250 = vsel %vm1240, %v259, %v448
        %v1251 = vsel %vm1240, %v261, %v450
        %v1252 = vsel %vm1240, %v262, %v452
        %v1253 = vsel %vm1240, %v264, %v454
        %v1254 = vsel %vm1240, %v265, %v456
        %v1255 = vsel %vm1240, %v267, %v458
        %v1256 = vsel %vm1240, %v268, %v460
        %v1257 = vsel %vm1240, %v270, %v462
        %v1258 = vsel %vm1240, %v271, %v464
        %v1259 = vsel %vm1240, %v273, %v466
        %v1260 = vsel %vm1240, %v274, %v468
        %v1261 = vsel %vm1240, %v276, %v470
        %v1262 = vsel %vm1240, %v277, %v472
        %v1263 = vsel %vm1240, %v279, %v474
        %v1264 = vsel %vm1240, %v280, %v476
        %v1265 = vsel %vm1240, %v282, %v478
        %v1266 = vsel %vm1240, %v283, %v480
        %v1267 = vsel %vm1240, %v285, %v482
        %v1268 = vsel %vm1240, %v286, %v484
        %v1269 = vsel %vm1240, %v288, %v486
        %v1270 = vsel %vm1240, %v289, %v488
        %v1271 = vsel %vm1240, %v291, %v490
        %v1272 = vsel %vm1240, %v292, %v492
        %vm1273 = vcmask 261120
        %v1274 = vsel %vm1273, %v1241, %v607
        %v1275 = vsel %vm1273, %v1242, %v609
        %v1276 = vsel %vm1273, %v1243, %v611
        %v1277 = vsel %vm1273, %v1244, %v613
        %v1278 = vsel %vm1273, %v1245, %v615
        %v1279 = vsel %vm1273, %v1246, %v617
        %v1280 = vsel %vm1273, %v1247, %v619
        %v1281 = vsel %vm1273, %v1248, %v621
        %v1282 = vsel %vm1273, %v1249, %v623
        %v1283 = vsel %vm1273, %v1250, %v625
        %v1284 = vsel %vm1273, %v1251, %v627
        %v1285 = vsel %vm1273, %v1252, %v629
        %v1286 = vsel %vm1273, %v1253, %v631
        %v1287 = vsel %vm1273, %v1254, %v633
        %v1288 = vsel %vm1273, %v1255, %v635
        %v1289 = vsel %vm1273, %v1256, %v637
        %v1290 = vsel %vm1273, %v1257, %v639
        %v1291 = vsel %vm1273, %v1258, %v641
        %v1292 = vsel %vm1273, %v1259, %v643
        %v1293 = vsel %vm1273, %v1260, %v645
        %v1294 = vsel %vm1273, %v1261, %v647
        %v1295 = vsel %vm1273, %v1262, %v649
        %v1296 = vsel %vm1273, %v1263, %v651
        %v1297 = vsel %vm1273, %v1264, %v653
        %v1298 = vsel %vm1273, %v1265, %v655
        %v1299 = vsel %vm1273, %v1266, %v657
        %v1300 = vsel %vm1273, %v1267, %v659
        %v1301 = vsel %vm1273, %v1268, %v661
        %v1302 = vsel %vm1273, %v1269, %v663
        %v1303 = vsel %vm1273, %v1270, %v665
        %v1304 = vsel %vm1273, %v1271, %v667
        %v1305 = vsel %vm1273, %v1272, %v669
        %vm1306 = vcmask 392192
        %v1307 = vsel %vm1306, %v1274, %v705
        %v1308 = vsel %vm1306, %v1275, %v707
        %v1309 = vsel %vm1306, %v1276, %v709
        %v1310 = vsel %vm1306, %v1277, %v711
        %v1311 = vsel %vm1306, %v1278, %v713
        %v1312 = vsel %vm1306, %v1279, %v715
        %v1313 = vsel %vm1306, %v1280, %v717
        %v1314 = vsel %vm1306, %v1281, %v719
        %v1315 = vsel %vm1306, %v1282, %v721
        %v1316 = vsel %vm1306, %v1283, %v723
        %v1317 = vsel %vm1306, %v1284, %v725
        %v1318 = vsel %vm1306, %v1285, %v727
        %v1319 = vsel %vm1306, %v1286, %v729
        %v1320 = vsel %vm1306, %v1287, %v731
        %v1321 = vsel %vm1306, %v1288, %v733
        %v1322 = vsel %vm1306, %v1289, %v735
        %v1323 = vsel %vm1306, %v1290, %v737
        %v1324 = vsel %vm1306, %v1291, %v739
        %v1325 = vsel %vm1306, %v1292, %v741
        %v1326 = vsel %vm1306, %v1293, %v743
        %v1327 = vsel %vm1306, %v1294, %v745
        %v1328 = vsel %vm1306, %v1295, %v747
        %v1329 = vsel %vm1306, %v1296, %v749
        %v1330 = vsel %vm1306, %v1297, %v751
        %v1331 = vsel %vm1306, %v1298, %v753
        %v1332 = vsel %vm1306, %v1299, %v755
        %v1333 = vsel %vm1306, %v1300, %v757
        %v1334 = vsel %vm1306, %v1301, %v759
        %v1335 = vsel %vm1306, %v1302, %v761
        %v1336 = vsel %vm1306, %v1303, %v763
        %v1337 = vsel %vm1306, %v1304, %v765
        %v1338 = vsel %vm1306, %v1305, %v767
        %vm1339 = vcmask 523264
        %v1340 = vsel %vm1339, %v1307, %v807
        %v1341 = vsel %vm1339, %v1308, %v809
        %v1342 = vsel %vm1339, %v1309, %v811
        %v1343 = vsel %vm1339, %v1310, %v813
        %v1344 = vsel %vm1339, %v1311, %v815
        %v1345 = vsel %vm1339, %v1312, %v817
        %v1346 = vsel %vm1339, %v1313, %v819
        %v1347 = vsel %vm1339, %v1314, %v821
        %v1348 = vsel %vm1339, %v1315, %v823
        %v1349 = vsel %vm1339, %v1316, %v825
        %v1350 = vsel %vm1339, %v1317, %v827
        %v1351 = vsel %vm1339, %v1318, %v829
        %v1352 = vsel %vm1339, %v1319, %v831
        %v1353 = vsel %vm1339, %v1320, %v833
        %v1354 = vsel %vm1339, %v1321, %v835
        %v1355 = vsel %vm1339, %v1322, %v837
        %v1356 = vsel %vm1339, %v1323, %v839
        %v1357 = vsel %vm1339, %v1324, %v841
        %v1358 = vsel %vm1339, %v1325, %v843
        %v1359 = vsel %vm1339, %v1326, %v845
        %v1360 = vsel %vm1339, %v1327, %v847
        %v1361 = vsel %vm1339, %v1328, %v849
        %v1362 = vsel %vm1339, %v1329, %v851
        %v1363 = vsel %vm1339, %v1330, %v853
        %v1364 = vsel %vm1339, %v1331, %v855
        %v1365 = vsel %vm1339, %v1332, %v857
        %v1366 = vsel %vm1339, %v1333, %v859
        %v1367 = vsel %vm1339, %v1334, %v861
        %v1368 = vsel %vm1339, %v1335, %v863
        %v1369 = vsel %vm1339, %v1336, %v865
        %v1370 = vsel %vm1339, %v1337, %v867
        %v1371 = vsel %vm1339, %v1338, %v869
        %vm1372 = vcmask 654336
        %v1373 = vsel %vm1372, %v1340, %v908
        %v1374 = vsel %vm1372, %v1341, %v910
        %v1375 = vsel %vm1372, %v1342, %v912
        %v1376 = vsel %vm1372, %v1343, %v914
        %v1377 = vsel %vm1372, %v1344, %v916
        %v1378 = vsel %vm1372, %v1345, %v918
        %v1379 = vsel %vm1372, %v1346, %v920
        %v1380 = vsel %vm1372, %v1347, %v922
        %v1381 = vsel %vm1372, %v1348, %v924
        %v1382 = vsel %vm1372, %v1349, %v926
        %v1383 = vsel %vm1372, %v1350, %v928
        %v1384 = vsel %vm1372, %v1351, %v930
        %v1385 = vsel %vm1372, %v1352, %v932
        %v1386 = vsel %vm1372, %v1353, %v934
        %v1387 = vsel %vm1372, %v1354, %v936
        %v1388 = vsel %vm1372, %v1355, %v938
        %v1389 = vsel %vm1372, %v1356, %v940
        %v1390 = vsel %vm1372, %v1357, %v942
        %v1391 = vsel %vm1372, %v1358, %v944
        %v1392 = vsel %vm1372, %v1359, %v946
        %v1393 = vsel %vm1372, %v1360, %v948
        %v1394 = vsel %vm1372, %v1361, %v950
        %v1395 = vsel %vm1372, %v1362, %v952
        %v1396 = vsel %vm1372, %v1363, %v954
        %v1397 = vsel %vm1372, %v1364, %v956
        %v1398 = vsel %vm1372, %v1365, %v958
        %v1399 = vsel %vm1372, %v1366, %v960
        %v1400 = vsel %vm1372, %v1367, %v962
        %v1401 = vsel %vm1372, %v1368, %v964
        %v1402 = vsel %vm1372, %v1369, %v966
        %v1403 = vsel %vm1372, %v1370, %v968
        %v1404 = vsel %vm1372, %v1371, %v970
        %vm1405 = vcmask 785408
        %v1406 = vsel %vm1405, %v1373, %v1006
        %v1407 = vsel %vm1405, %v1374, %v1008
        %v1408 = vsel %vm1405, %v1375, %v1010
        %v1409 = vsel %vm1405, %v1376, %v1012
        %v1410 = vsel %vm1405, %v1377, %v1014
        %v1411 = vsel %vm1405, %v1378, %v1016
        %v1412 = vsel %vm1405, %v1379, %v1018
        %v1413 = vsel %vm1405, %v1380, %v1020
        %v1414 = vsel %vm1405, %v1381, %v1022
        %v1415 = vsel %vm1405, %v1382, %v1024
        %v1416 = vsel %vm1405, %v1383, %v1026
        %v1417 = vsel %vm1405, %v1384, %v1028
        %v1418 = vsel %vm1405, %v1385, %v1030
        %v1419 = vsel %vm1405, %v1386, %v1032
        %v1420 = vsel %vm1405, %v1387, %v1034
        %v1421 = vsel %vm1405, %v1388, %v1036
        %v1422 = vsel %vm1405, %v1389, %v1038
        %v1423 = vsel %vm1405, %v1390, %v1040
        %v1424 = vsel %vm1405, %v1391, %v1042
        %v1425 = vsel %vm1405, %v1392, %v1044
        %v1426 = vsel %vm1405, %v1393, %v1046
        %v1427 = vsel %vm1405, %v1394, %v1048
        %v1428 = vsel %vm1405, %v1395, %v1050
        %v1429 = vsel %vm1405, %v1396, %v1052
        %v1430 = vsel %vm1405, %v1397, %v1054
        %v1431 = vsel %vm1405, %v1398, %v1056
        %v1432 = vsel %vm1405, %v1399, %v1058
        %v1433 = vsel %vm1405, %v1400, %v1060
        %v1434 = vsel %vm1405, %v1401, %v1062
        %v1435 = vsel %vm1405, %v1402, %v1064
        %v1436 = vsel %vm1405, %v1403, %v1066
        %v1437 = vsel %vm1405, %v1404, %v1068
        %vm1438 = vcmask 916480
        %v1439 = vsel %vm1438, %v1406, %v1108
        %v1440 = vsel %vm1438, %v1407, %v1110
        %v1441 = vsel %vm1438, %v1408, %v1112
        %v1442 = vsel %vm1438, %v1409, %v1114
        %v1443 = vsel %vm1438, %v1410, %v1116
        %v1444 = vsel %vm1438, %v1411, %v1118
        %v1445 = vsel %vm1438, %v1412, %v1120
        %v1446 = vsel %vm1438, %v1413, %v1122
        %v1447 = vsel %vm1438, %v1414, %v1124
        %v1448 = vsel %vm1438, %v1415, %v1126
        %v1449 = vsel %vm1438, %v1416, %v1128
        %v1450 = vsel %vm1438, %v1417, %v1130
        %v1451 = vsel %vm1438, %v1418, %v1132
        %v1452 = vsel %vm1438, %v1419, %v1134
        %v1453 = vsel %vm1438, %v1420, %v1136
        %v1454 = vsel %vm1438, %v1421, %v1138
        %v1455 = vsel %vm1438, %v1422, %v1140
        %v1456 = vsel %vm1438, %v1423, %v1142
        %v1457 = vsel %vm1438, %v1424, %v1144
        %v1458 = vsel %vm1438, %v1425, %v1146
        %v1459 = vsel %vm1438, %v1426, %v1148
        %v1460 = vsel %vm1438, %v1427, %v1150
        %v1461 = vsel %vm1438, %v1428, %v1152
        %v1462 = vsel %vm1438, %v1429, %v1154
        %v1463 = vsel %vm1438, %v1430, %v1156
        %v1464 = vsel %vm1438, %v1431, %v1158
        %v1465 = vsel %vm1438, %v1432, %v1160
        %v1466 = vsel %vm1438, %v1433, %v1162
        %v1467 = vsel %vm1438, %v1434, %v1164
        %v1468 = vsel %vm1438, %v1435, %v1166
        %v1469 = vsel %vm1438, %v1436, %v1168
        %v1470 = vsel %vm1438, %v1437, %v1170
        %v1471 = vpack.c.bf16 %v1440, %v1439
        %v1472 = vpack.c.bf16 %v540, %v538
        %v1473 = vpack.c.bf16 %v1442, %v1441
        %v1474 = vpack.c.bf16 %v545, %v543
        %v1475 = vpack.c.bf16 %v1444, %v1443
        %v1476 = vpack.c.bf16 %v550, %v548
        %v1477 = vpack.c.bf16 %v1446, %v1445
        %v1478 = vpack.c.bf16 %v555, %v553
        %v1479 = vpack.c.bf16 %v1448, %v1447
        %v1480 = vpack.c.bf16 %v560, %v558
        %v1481 = vpack.c.bf16 %v1450, %v1449
        %v1482 = vpack.c.bf16 %v565, %v563
        %v1483 = vpack.c.bf16 %v1452, %v1451
        %v1484 = vpack.c.bf16 %v570, %v568
        %v1485 = vpack.c.bf16 %v1454, %v1453
        %v1486 = vpack.c.bf16 %v575, %v573
        %v1487 = vpack.c.bf16 %v1456, %v1455
        %v1488 = vpack.c.bf16 %v580, %v578
        %v1489 = vpack.c.bf16 %v1458, %v1457
        %v1490 = vpack.c.bf16 %v585, %v583
        %v1491 = vpack.c.bf16 %v1460, %v1459
        %v1492 = vpack.c.bf16 %v590, %v588
        %v1493 = vpack.c.bf16 %v1462, %v1461
        %v1494 = vpack.c.bf16 %v595, %v593
        %v1495 = vpack.c.bf16 %v1464, %v1463
        %v1496 = vpack.c.bf16 %v600, %v598
        %v1497 = vpack.c.bf16 %v1466, %v1465
        %v1498 = vpack.c.bf16 %v605, %v603
        %v1499 = vpack.c.bf16 %v1468, %v1467
        %v1500 = vpack.c.bf16 %v906, %v904
        %v1501 = vpack.c.bf16 %v1470, %v1469
        %v1502 = vpack.c.bf16 %v1207, %v1205
        %v1503 = vld [vmem:[%s1] sm:$0xf]
        %v1504 = vld [vmem:[%s1 + $0x4] sm:$0xf]
        %v1505 = vld [vmem:[%s1 + $0x8] sm:$0xf]
        %v1506 = vld [vmem:[%s1 + $0xc] sm:$0xf]
        %v1507 = vld [vmem:[%s1 + $0x10] sm:$0xf]
        %v1508 = vld [vmem:[%s1 + $0x14] sm:$0xf]
        %v1509 = vld [vmem:[%s1 + $0x18] sm:$0xf]
        %v1510 = vld [vmem:[%s1 + $0x1c] sm:$0xf]
        %v1511 = vld [vmem:[%s1 + $0x20] sm:$0xf]
        %v1512 = vld [vmem:[%s1 + $0x24] sm:$0xf]
        %v1513 = vld [vmem:[%s1 + $0x28] sm:$0xf]
        %v1514 = vld [vmem:[%s1 + $0x2c] sm:$0xf]
        %v1515 = vld [vmem:[%s1 + $0x30] sm:$0xf]
        %v1516 = vld [vmem:[%s1 + $0x34] sm:$0xf]
        %v1517 = vld [vmem:[%s1 + $0x38] sm:$0xf]
        %v1518 = vld [vmem:[%s1 + $0x3c] sm:$0xf]
        %v1519 = vld [vmem:[%s1 + $0x40] sm:$0xf]
        %v1520 = vld [vmem:[%s1 + $0x44] sm:$0xf]
        %v1521 = vld [vmem:[%s2] sm:$0x1]
        %v1523 = vlaneseq
        %v1524 = vshrl.u32 %v1523, 7
        %v1525 = vsub.s32 0, %v1524
        %v1526 = vrot.slane %v1521, %v1525
        %v1546 = vunpack.c.l.b16 %v1503
        %v1547 = vunpack.c.l.b16 %v1504
        %v1548 = vunpack.c.l.b16 %v1505
        %v1549 = vunpack.c.l.b16 %v1506
        %v1550 = vunpack.c.l.b16 %v1507
        %v1551 = vunpack.c.l.b16 %v1508
        %v1552 = vunpack.c.l.b16 %v1509
        %v1553 = vunpack.c.l.b16 %v1510
        %v1554 = vunpack.c.l.b16 %v1511
        %v1555 = vunpack.c.l.b16 %v1512
        %v1556 = vunpack.c.l.b16 %v1513
        %v1557 = vunpack.c.l.b16 %v1514
        %v1558 = vunpack.c.l.b16 %v1515
        %v1559 = vunpack.c.l.b16 %v1516
        %v1560 = vunpack.c.l.b16 %v1517
        %v1561 = vunpack.c.l.b16 %v1518
        %v1562 = vunpack.c.l.b16 %v1519
        %v1563 = vunpack.c.l.b16 %v1520
        %v1564 = vpack.c.b16 %v1547, %v1546
        %v1565 = vpack.c.b16 %v1549, %v1548
        %v1566 = vpack.c.b16 %v1551, %v1550
        %v1567 = vpack.c.b16 %v1553, %v1552
        %v1568 = vpack.c.b16 %v1555, %v1554
        %v1569 = vpack.c.b16 %v1557, %v1556
        %v1570 = vpack.c.b16 %v1559, %v1558
        %v1571 = vpack.c.b16 %v1561, %v1560
        %v1572 = vpack.c.b16 %v1563, %v1562
        %v1583 = vsel %vm1240, %v1472, 0
        %v1586 = vsel %vm1240, %v1474, 0
        %v1589 = vsel %vm1240, %v1476, 0
        %v1592 = vsel %vm1240, %v1478, 0
        %v1595 = vsel %vm1240, %v1480, 0
        %v1598 = vsel %vm1240, %v1482, 0
        %v1601 = vsel %vm1240, %v1484, 0
        %v1604 = vsel %vm1240, %v1486, 0
        %v1607 = vsel %vm1240, %v1488, 0
        %v1610 = vsel %vm1240, %v1490, 0
        %v1613 = vsel %vm1240, %v1492, 0
        %v1616 = vsel %vm1240, %v1494, 0
        %v1619 = vsel %vm1240, %v1496, 0
        %v1622 = vsel %vm1240, %v1498, 0
        %v1625 = vsel %vm1240, %v1500, 0
        %v1628 = vsel %vm1240, %v1502, 0
        %1630 = vmatprep.subr.bf16.mxu0 0
        %1631 = vmatpush1.bf16.msra.mxu0 %v1564
        %1632 = vmatprep.subr.bf16.mxu0 0
        %1633 = vmatpush1.bf16.msra.mxu0 %v1565
        %1634 = vmatprep.subr.bf16.mxu0 0
        %1635 = vmatpush1.bf16.msra.mxu0 %v1566
        %1636 = vmatprep.subr.bf16.mxu0 0
        %1637 = vmatpush1.bf16.msra.mxu0 %v1567
        %1638 = vmatprep.subr.bf16.mxu0 0
        %1639 = vmatpush1.bf16.msra.mxu0 %v1568
        %1640 = vmatprep.subr.bf16.mxu0 0
        %1641 = vmatpush1.bf16.msra.mxu0 %v1569
        %1642 = vmatprep.subr.bf16.mxu0 0
        %1643 = vmatpush1.bf16.msra.mxu0 %v1570
        %1644 = vmatprep.subr.bf16.mxu0 0
        %1645 = vmatpush1.bf16.msra.mxu0 %v1571
        %1646 = vmatprep.subr.bf16.mxu0 0
        %1647 = vmatpush1.bf16.msra.mxu0 %v1572
        %1648 = vmatprep.subr.bf16.mxu0 0
        %1649 = vmatpush1.bf16.msra.mxu0 0
        %1650 = vmatprep.subr.bf16.mxu0 0
        %1651 = vmatpush1.bf16.msra.mxu0 0
        %1652 = vmatprep.subr.bf16.mxu0 0
        %1653 = vmatpush1.bf16.msra.mxu0 0
        %1654 = vmatprep.subr.bf16.mxu0 0
        %1655 = vmatpush1.bf16.msra.mxu0 0
        %1656 = vmatprep.subr.bf16.mxu0 0
        %1657 = vmatpush1.bf16.msra.mxu0 0
        %1658 = vmatprep.subr.bf16.mxu0 0
        %1659 = vmatpush1.bf16.msra.mxu0 0
        %1660 = vmatprep.subr.bf16.mxu0 0
        %1661 = vmatpush1.bf16.msra.mxu0 0
        %1662 = vmatprep.mubr.bf16.mxu0 %v1583
        %1663 = vmatmul.mubr.bf16.gmra.mrb[0].mxu0 %v1471
        %v1664 = vpop.f32.mrb[0].mxu0
        %v1665 = vadd.f32 %v1526, %v1664
        %v1666 = vpop.f32.mrb[0].mxu0
        %v1667 = vpop.f32.mrb[0].mxu0
        %v1668 = vadd.f32 %v1526, %v1667
        %v1669 = vpop.f32.mrb[0].mxu0
        %1670 = vmatprep.mubr.bf16.mxu0 %v1586
        %1671 = vmatmul.mubr.bf16.gmra.mrb[0].mxu0 %v1473
        %v1672 = vpop.f32.mrb[0].mxu0
        %v1673 = vadd.f32 %v1526, %v1672
        %v1674 = vpop.f32.mrb[0].mxu0
        %v1675 = vpop.f32.mrb[0].mxu0
        %v1676 = vadd.f32 %v1526, %v1675
        %v1677 = vpop.f32.mrb[0].mxu0
        %1678 = vmatprep.mubr.bf16.mxu0 %v1589
        %1679 = vmatmul.mubr.bf16.gmra.mrb[0].mxu0 %v1475
        %v1680 = vpop.f32.mrb[0].mxu0
        %v1681 = vadd.f32 %v1526, %v1680
        %v1682 = vpop.f32.mrb[0].mxu0
        %v1683 = vpop.f32.mrb[0].mxu0
        %v1684 = vadd.f32 %v1526, %v1683
        %v1685 = vpop.f32.mrb[0].mxu0
        %1686 = vmatprep.mubr.bf16.mxu0 %v1592
        %1687 = vmatmul.mubr.bf16.gmra.mrb[0].mxu0 %v1477
        %v1688 = vpop.f32.mrb[0].mxu0
        %v1689 = vadd.f32 %v1526, %v1688
        %v1690 = vpop.f32.mrb[0].mxu0
        %v1691 = vpop.f32.mrb[0].mxu0
        %v1692 = vadd.f32 %v1526, %v1691
        %v1693 = vpop.f32.mrb[0].mxu0
        %1694 = vmatprep.mubr.bf16.mxu0 %v1595
        %1695 = vmatmul.mubr.bf16.gmra.mrb[0].mxu0 %v1479
        %v1696 = vpop.f32.mrb[0].mxu0
        %v1697 = vadd.f32 %v1526, %v1696
        %v1698 = vpop.f32.mrb[0].mxu0
        %v1699 = vpop.f32.mrb[0].mxu0
        %v1700 = vadd.f32 %v1526, %v1699
        %v1701 = vpop.f32.mrb[0].mxu0
        %1702 = vmatprep.mubr.bf16.mxu0 %v1598
        %1703 = vmatmul.mubr.bf16.gmra.mrb[0].mxu0 %v1481
        %v1704 = vpop.f32.mrb[0].mxu0
        %v1705 = vadd.f32 %v1526, %v1704
        %v1706 = vpop.f32.mrb[0].mxu0
        %v1707 = vpop.f32.mrb[0].mxu0
        %v1708 = vadd.f32 %v1526, %v1707
        %v1709 = vpop.f32.mrb[0].mxu0
        %1710 = vmatprep.mubr.bf16.mxu0 %v1601
        %1711 = vmatmul.mubr.bf16.gmra.mrb[0].mxu0 %v1483
        %v1712 = vpop.f32.mrb[0].mxu0
        %v1713 = vadd.f32 %v1526, %v1712
        %v1714 = vpop.f32.mrb[0].mxu0
        %v1715 = vpop.f32.mrb[0].mxu0
        %v1716 = vadd.f32 %v1526, %v1715
        %v1717 = vpop.f32.mrb[0].mxu0
        %1718 = vmatprep.mubr.bf16.mxu0 %v1604
        %1719 = vmatmul.mubr.bf16.gmra.mrb[0].mxu0 %v1485
        %v1720 = vpop.f32.mrb[0].mxu0
        %v1721 = vadd.f32 %v1526, %v1720
        %v1722 = vpop.f32.mrb[0].mxu0
        %v1723 = vpop.f32.mrb[0].mxu0
        %v1724 = vadd.f32 %v1526, %v1723
        %v1725 = vpop.f32.mrb[0].mxu0
        %1726 = vmatprep.mubr.bf16.mxu0 %v1607
        %1727 = vmatmul.mubr.bf16.gmra.mrb[0].mxu0 %v1487
        %v1728 = vpop.f32.mrb[0].mxu0
        %v1729 = vadd.f32 %v1526, %v1728
        %v1730 = vpop.f32.mrb[0].mxu0
        %v1731 = vpop.f32.mrb[0].mxu0
        %v1732 = vadd.f32 %v1526, %v1731
        %v1733 = vpop.f32.mrb[0].mxu0
        %1734 = vmatprep.mubr.bf16.mxu0 %v1610
        %1735 = vmatmul.mubr.bf16.gmra.mrb[0].mxu0 %v1489
        %v1736 = vpop.f32.mrb[0].mxu0
        %v1737 = vadd.f32 %v1526, %v1736
        %v1738 = vpop.f32.mrb[0].mxu0
        %v1739 = vpop.f32.mrb[0].mxu0
        %v1740 = vadd.f32 %v1526, %v1739
        %v1741 = vpop.f32.mrb[0].mxu0
        %1742 = vmatprep.mubr.bf16.mxu0 %v1613
        %1743 = vmatmul.mubr.bf16.gmra.mrb[0].mxu0 %v1491
        %v1744 = vpop.f32.mrb[0].mxu0
        %v1745 = vadd.f32 %v1526, %v1744
        %v1746 = vpop.f32.mrb[0].mxu0
        %v1747 = vpop.f32.mrb[0].mxu0
        %v1748 = vadd.f32 %v1526, %v1747
        %v1749 = vpop.f32.mrb[0].mxu0
        %1750 = vmatprep.mubr.bf16.mxu0 %v1616
        %1751 = vmatmul.mubr.bf16.gmra.mrb[0].mxu0 %v1493
        %v1752 = vpop.f32.mrb[0].mxu0
        %v1753 = vadd.f32 %v1526, %v1752
        %v1754 = vpop.f32.mrb[0].mxu0
        %v1755 = vpop.f32.mrb[0].mxu0
        %v1756 = vadd.f32 %v1526, %v1755
        %v1757 = vpop.f32.mrb[0].mxu0
        %1758 = vmatprep.mubr.bf16.mxu0 %v1619
        %1759 = vmatmul.mubr.bf16.gmra.mrb[0].mxu0 %v1495
        %v1760 = vpop.f32.mrb[0].mxu0
        %v1761 = vadd.f32 %v1526, %v1760
        %v1762 = vpop.f32.mrb[0].mxu0
        %v1763 = vpop.f32.mrb[0].mxu0
        %v1764 = vadd.f32 %v1526, %v1763
        %v1765 = vpop.f32.mrb[0].mxu0
        %1766 = vmatprep.mubr.bf16.mxu0 %v1622
        %1767 = vmatmul.mubr.bf16.gmra.mrb[0].mxu0 %v1497
        %v1768 = vpop.f32.mrb[0].mxu0
        %v1769 = vadd.f32 %v1526, %v1768
        %v1770 = vpop.f32.mrb[0].mxu0
        %v1771 = vpop.f32.mrb[0].mxu0
        %v1772 = vadd.f32 %v1526, %v1771
        %v1773 = vpop.f32.mrb[0].mxu0
        %1774 = vmatprep.mubr.bf16.mxu0 %v1625
        %1775 = vmatmul.mubr.bf16.gmra.mrb[0].mxu0 %v1499
        %v1776 = vpop.f32.mrb[0].mxu0
        %v1777 = vadd.f32 %v1526, %v1776
        %v1778 = vpop.f32.mrb[0].mxu0
        %v1779 = vpop.f32.mrb[0].mxu0
        %v1780 = vadd.f32 %v1526, %v1779
        %v1781 = vpop.f32.mrb[0].mxu0
        %1782 = vmatprep.mubr.bf16.mxu0 %v1628
        %1783 = vmatmul.mubr.bf16.gmra.mrb[0].mxu0 %v1501
        %v1784 = vpop.f32.mrb[0].mxu0
        %v1785 = vadd.f32 %v1526, %v1784
        %v1786 = vpop.f32.mrb[0].mxu0
        %v1787 = vpop.f32.mrb[0].mxu0
        %v1788 = vadd.f32 %v1526, %v1787
        %v1789 = vpop.f32.mrb[0].mxu0
        %1790 = vdwg.mxu0
        %v1791 = vmax.f32 %v1665, 0.0
        %v1792 = vmax.f32 %v1668, 0.0
        %v1793 = vmax.f32 %v1673, 0.0
        %v1794 = vmax.f32 %v1676, 0.0
        %v1795 = vmax.f32 %v1681, 0.0
        %v1796 = vmax.f32 %v1684, 0.0
        %v1797 = vmax.f32 %v1689, 0.0
        %v1798 = vmax.f32 %v1692, 0.0
        %v1799 = vmax.f32 %v1697, 0.0
        %v1800 = vmax.f32 %v1700, 0.0
        %v1801 = vmax.f32 %v1705, 0.0
        %v1802 = vmax.f32 %v1708, 0.0
        %v1803 = vmax.f32 %v1713, 0.0
        %v1804 = vmax.f32 %v1716, 0.0
        %v1805 = vmax.f32 %v1721, 0.0
        %v1806 = vmax.f32 %v1724, 0.0
        %v1807 = vmax.f32 %v1729, 0.0
        %v1808 = vmax.f32 %v1732, 0.0
        %v1809 = vmax.f32 %v1737, 0.0
        %v1810 = vmax.f32 %v1740, 0.0
        %v1811 = vmax.f32 %v1745, 0.0
        %v1812 = vmax.f32 %v1748, 0.0
        %v1813 = vmax.f32 %v1753, 0.0
        %v1814 = vmax.f32 %v1756, 0.0
        %v1815 = vmax.f32 %v1761, 0.0
        %v1816 = vmax.f32 %v1764, 0.0
        %v1817 = vmax.f32 %v1769, 0.0
        %v1818 = vmax.f32 %v1772, 0.0
        %v1819 = vmax.f32 %v1777, 0.0
        %v1820 = vmax.f32 %v1780, 0.0
        %v1821 = vmax.f32 %v1785, 0.0
        %v1822 = vmax.f32 %v1788, 0.0
        %v1823 = vpack.c.bf16 %v1792, %v1791
        %v1824 = vpack.c.bf16 %v1794, %v1793
        %v1825 = vpack.c.bf16 %v1796, %v1795
        %v1826 = vpack.c.bf16 %v1798, %v1797
        %v1827 = vpack.c.bf16 %v1800, %v1799
        %v1828 = vpack.c.bf16 %v1802, %v1801
        %v1829 = vpack.c.bf16 %v1804, %v1803
        %v1830 = vpack.c.bf16 %v1806, %v1805
        %v1831 = vpack.c.bf16 %v1808, %v1807
        %v1832 = vpack.c.bf16 %v1810, %v1809
        %v1833 = vpack.c.bf16 %v1812, %v1811
        %v1834 = vpack.c.bf16 %v1814, %v1813
        %v1835 = vpack.c.bf16 %v1816, %v1815
        %v1836 = vpack.c.bf16 %v1818, %v1817
        %v1837 = vpack.c.bf16 %v1820, %v1819
        %v1838 = vpack.c.bf16 %v1822, %v1821
        %v1839 = vld [vmem:[%s3] sm:$0xf]
        %v1840 = vld [vmem:[%s3 + $0x4] sm:$0xf]
        %v1841 = vld [vmem:[%s3 + $0x8] sm:$0xf]
        %v1842 = vld [vmem:[%s3 + $0xc] sm:$0xf]
        %v1843 = vld [vmem:[%s3 + $0x10] sm:$0xf]
        %v1844 = vld [vmem:[%s3 + $0x14] sm:$0xf]
        %v1845 = vld [vmem:[%s3 + $0x18] sm:$0xf]
        %v1846 = vld [vmem:[%s3 + $0x1c] sm:$0xf]
        %v1847 = vld [vmem:[%s3 + $0x20] sm:$0xf]
        %v1848 = vld [vmem:[%s3 + $0x24] sm:$0xf]
        %v1849 = vld [vmem:[%s3 + $0x28] sm:$0xf]
        %v1850 = vld [vmem:[%s3 + $0x2c] sm:$0xf]
        %v1851 = vld [vmem:[%s3 + $0x30] sm:$0xf]
        %v1852 = vld [vmem:[%s3 + $0x34] sm:$0xf]
        %v1853 = vld [vmem:[%s3 + $0x38] sm:$0xf]
        %v1854 = vld [vmem:[%s3 + $0x3c] sm:$0xf]
        %v1855 = vld [vmem:[%s4] sm:$0x1]
        %v1857 = vlaneseq
        %v1858 = vshrl.u32 %v1857, 7
        %v1859 = vsub.s32 0, %v1858
        %v1860 = vrot.slane %v1855, %v1859
        %v1878 = vunpack.c.l.b16 %v1839
        %v1879 = vunpack.c.l.b16 %v1840
        %v1880 = vunpack.c.l.b16 %v1841
        %v1881 = vunpack.c.l.b16 %v1842
        %v1882 = vunpack.c.l.b16 %v1843
        %v1883 = vunpack.c.l.b16 %v1844
        %v1884 = vunpack.c.l.b16 %v1845
        %v1885 = vunpack.c.l.b16 %v1846
        %v1886 = vunpack.c.l.b16 %v1847
        %v1887 = vunpack.c.l.b16 %v1848
        %v1888 = vunpack.c.l.b16 %v1849
        %v1889 = vunpack.c.l.b16 %v1850
        %v1890 = vunpack.c.l.b16 %v1851
        %v1891 = vunpack.c.l.b16 %v1852
        %v1892 = vunpack.c.l.b16 %v1853
        %v1893 = vunpack.c.l.b16 %v1854
        %v1894 = vpack.c.b16 %v1879, %v1878
        %v1895 = vpack.c.b16 %v1881, %v1880
        %v1896 = vpack.c.b16 %v1883, %v1882
        %v1897 = vpack.c.b16 %v1885, %v1884
        %v1898 = vpack.c.b16 %v1887, %v1886
        %v1899 = vpack.c.b16 %v1889, %v1888
        %v1900 = vpack.c.b16 %v1891, %v1890
        %v1901 = vpack.c.b16 %v1893, %v1892
        %1910 = vmatprep.subr.bf16.mxu0 0
        %1911 = vmatpush1.bf16.msra.mxu0 %v1894
        %1912 = vmatprep.subr.bf16.mxu0 0
        %1913 = vmatpush1.bf16.msra.mxu0 %v1895
        %1914 = vmatprep.subr.bf16.mxu0 0
        %1915 = vmatpush1.bf16.msra.mxu0 %v1896
        %1916 = vmatprep.subr.bf16.mxu0 0
        %1917 = vmatpush1.bf16.msra.mxu0 %v1897
        %1918 = vmatprep.subr.bf16.mxu0 0
        %1919 = vmatpush1.bf16.msra.mxu0 %v1898
        %1920 = vmatprep.subr.bf16.mxu0 0
        %1921 = vmatpush1.bf16.msra.mxu0 %v1899
        %1922 = vmatprep.subr.bf16.mxu0 0
        %1923 = vmatpush1.bf16.msra.mxu0 %v1900
        %1924 = vmatprep.subr.bf16.mxu0 0
        %1925 = vmatpush1.bf16.msra.mxu0 %v1901
        %1926 = vmatprep.subr.bf16.mxu0 0
        %1927 = vmatpush1.bf16.msra.mxu0 0
        %1928 = vmatprep.subr.bf16.mxu0 0
        %1929 = vmatpush1.bf16.msra.mxu0 0
        %1930 = vmatprep.subr.bf16.mxu0 0
        %1931 = vmatpush1.bf16.msra.mxu0 0
        %1932 = vmatprep.subr.bf16.mxu0 0
        %1933 = vmatpush1.bf16.msra.mxu0 0
        %1934 = vmatprep.subr.bf16.mxu0 0
        %1935 = vmatpush1.bf16.msra.mxu0 0
        %1936 = vmatprep.subr.bf16.mxu0 0
        %1937 = vmatpush1.bf16.msra.mxu0 0
        %1938 = vmatprep.subr.bf16.mxu0 0
        %1939 = vmatpush1.bf16.msra.mxu0 0
        %1940 = vmatprep.subr.bf16.mxu0 0
        %1941 = vmatpush1.bf16.msra.mxu0 0
        %1942 = vmatprep.mubr.bf16.mxu0 0
        %1943 = vmatmul.mubr.bf16.gmra.mrb[0].mxu0 %v1823
        %v1944 = vpop.f32.mrb[0].mxu0
        %v1945 = vadd.f32 %v1860, %v1944
        %v1946 = vpop.f32.mrb[0].mxu0
        %v1947 = vpop.f32.mrb[0].mxu0
        %v1948 = vadd.f32 %v1860, %v1947
        %v1949 = vpop.f32.mrb[0].mxu0
        %1950 = vmatprep.mubr.bf16.mxu0 0
        %1951 = vmatmul.mubr.bf16.gmra.mrb[0].mxu0 %v1824
        %v1952 = vpop.f32.mrb[0].mxu0
        %v1953 = vadd.f32 %v1860, %v1952
        %v1954 = vpop.f32.mrb[0].mxu0
        %v1955 = vpop.f32.mrb[0].mxu0
        %v1956 = vadd.f32 %v1860, %v1955
        %v1957 = vpop.f32.mrb[0].mxu0
        %1958 = vmatprep.mubr.bf16.mxu0 0
        %1959 = vmatmul.mubr.bf16.gmra.mrb[0].mxu0 %v1825
        %v1960 = vpop.f32.mrb[0].mxu0
        %v1961 = vadd.f32 %v1860, %v1960
        %v1962 = vpop.f32.mrb[0].mxu0
        %v1963 = vpop.f32.mrb[0].mxu0
        %v1964 = vadd.f32 %v1860, %v1963
        %v1965 = vpop.f32.mrb[0].mxu0
        %1966 = vmatprep.mubr.bf16.mxu0 0
        %1967 = vmatmul.mubr.bf16.gmra.mrb[0].mxu0 %v1826
        %v1968 = vpop.f32.mrb[0].mxu0
        %v1969 = vadd.f32 %v1860, %v1968
        %v1970 = vpop.f32.mrb[0].mxu0
        %v1971 = vpop.f32.mrb[0].mxu0
        %v1972 = vadd.f32 %v1860, %v1971
        %v1973 = vpop.f32.mrb[0].mxu0
        %1974 = vmatprep.mubr.bf16.mxu0 0
        %1975 = vmatmul.mubr.bf16.gmra.mrb[0].mxu0 %v1827
        %v1976 = vpop.f32.mrb[0].mxu0
        %v1977 = vadd.f32 %v1860, %v1976
        %v1978 = vpop.f32.mrb[0].mxu0
        %v1979 = vpop.f32.mrb[0].mxu0
        %v1980 = vadd.f32 %v1860, %v1979
        %v1981 = vpop.f32.mrb[0].mxu0
        %1982 = vmatprep.mubr.bf16.mxu0 0
        %1983 = vmatmul.mubr.bf16.gmra.mrb[0].mxu0 %v1828
        %v1984 = vpop.f32.mrb[0].mxu0
        %v1985 = vadd.f32 %v1860, %v1984
        %v1986 = vpop.f32.mrb[0].mxu0
        %v1987 = vpop.f32.mrb[0].mxu0
        %v1988 = vadd.f32 %v1860, %v1987
        %v1989 = vpop.f32.mrb[0].mxu0
        %1990 = vmatprep.mubr.bf16.mxu0 0
        %1991 = vmatmul.mubr.bf16.gmra.mrb[0].mxu0 %v1829
        %v1992 = vpop.f32.mrb[0].mxu0
        %v1993 = vadd.f32 %v1860, %v1992
        %v1994 = vpop.f32.mrb[0].mxu0
        %v1995 = vpop.f32.mrb[0].mxu0
        %v1996 = vadd.f32 %v1860, %v1995
        %v1997 = vpop.f32.mrb[0].mxu0
        %1998 = vmatprep.mubr.bf16.mxu0 0
        %1999 = vmatmul.mubr.bf16.gmra.mrb[0].mxu0 %v1830
        %v2000 = vpop.f32.mrb[0].mxu0
        %v2001 = vadd.f32 %v1860, %v2000
        %v2002 = vpop.f32.mrb[0].mxu0
        %v2003 = vpop.f32.mrb[0].mxu0
        %v2004 = vadd.f32 %v1860, %v2003
        %v2005 = vpop.f32.mrb[0].mxu0
        %2006 = vmatprep.mubr.bf16.mxu0 0
        %2007 = vmatmul.mubr.bf16.gmra.mrb[0].mxu0 %v1831
        %v2008 = vpop.f32.mrb[0].mxu0
        %v2009 = vadd.f32 %v1860, %v2008
        %v2010 = vpop.f32.mrb[0].mxu0
        %v2011 = vpop.f32.mrb[0].mxu0
        %v2012 = vadd.f32 %v1860, %v2011
        %v2013 = vpop.f32.mrb[0].mxu0
        %2014 = vmatprep.mubr.bf16.mxu0 0
        %2015 = vmatmul.mubr.bf16.gmra.mrb[0].mxu0 %v1832
        %v2016 = vpop.f32.mrb[0].mxu0
        %v2017 = vadd.f32 %v1860, %v2016
        %v2018 = vpop.f32.mrb[0].mxu0
        %v2019 = vpop.f32.mrb[0].mxu0
        %v2020 = vadd.f32 %v1860, %v2019
        %v2021 = vpop.f32.mrb[0].mxu0
        %2022 = vmatprep.mubr.bf16.mxu0 0
        %2023 = vmatmul.mubr.bf16.gmra.mrb[0].mxu0 %v1833
        %v2024 = vpop.f32.mrb[0].mxu0
        %v2025 = vadd.f32 %v1860, %v2024
        %v2026 = vpop.f32.mrb[0].mxu0
        %v2027 = vpop.f32.mrb[0].mxu0
        %v2028 = vadd.f32 %v1860, %v2027
        %v2029 = vpop.f32.mrb[0].mxu0
        %2030 = vmatprep.mubr.bf16.mxu0 0
        %2031 = vmatmul.mubr.bf16.gmra.mrb[0].mxu0 %v1834
        %v2032 = vpop.f32.mrb[0].mxu0
        %v2033 = vadd.f32 %v1860, %v2032
        %v2034 = vpop.f32.mrb[0].mxu0
        %v2035 = vpop.f32.mrb[0].mxu0
        %v2036 = vadd.f32 %v1860, %v2035
        %v2037 = vpop.f32.mrb[0].mxu0
        %2038 = vmatprep.mubr.bf16.mxu0 0
        %2039 = vmatmul.mubr.bf16.gmra.mrb[0].mxu0 %v1835
        %v2040 = vpop.f32.mrb[0].mxu0
        %v2041 = vadd.f32 %v1860, %v2040
        %v2042 = vpop.f32.mrb[0].mxu0
        %v2043 = vpop.f32.mrb[0].mxu0
        %v2044 = vadd.f32 %v1860, %v2043
        %v2045 = vpop.f32.mrb[0].mxu0
        %2046 = vmatprep.mubr.bf16.mxu0 0
        %2047 = vmatmul.mubr.bf16.gmra.mrb[0].mxu0 %v1836
        %v2048 = vpop.f32.mrb[0].mxu0
        %v2049 = vadd.f32 %v1860, %v2048
        %v2050 = vpop.f32.mrb[0].mxu0
        %v2051 = vpop.f32.mrb[0].mxu0
        %v2052 = vadd.f32 %v1860, %v2051
        %v2053 = vpop.f32.mrb[0].mxu0
        %2054 = vmatprep.mubr.bf16.mxu0 0
        %2055 = vmatmul.mubr.bf16.gmra.mrb[0].mxu0 %v1837
        %v2056 = vpop.f32.mrb[0].mxu0
        %v2057 = vadd.f32 %v1860, %v2056
        %v2058 = vpop.f32.mrb[0].mxu0
        %v2059 = vpop.f32.mrb[0].mxu0
        %v2060 = vadd.f32 %v1860, %v2059
        %v2061 = vpop.f32.mrb[0].mxu0
        %2062 = vmatprep.mubr.bf16.mxu0 0
        %2063 = vmatmul.mubr.bf16.gmra.mrb[0].mxu0 %v1838
        %v2064 = vpop.f32.mrb[0].mxu0
        %v2065 = vadd.f32 %v1860, %v2064
        %v2066 = vpop.f32.mrb[0].mxu0
        %v2067 = vpop.f32.mrb[0].mxu0
        %v2068 = vadd.f32 %v1860, %v2067
        %v2069 = vpop.f32.mrb[0].mxu0
        %2070 = vdwg.mxu0
        %2071 = vst [vmem:[%s236] sm:$0xff] %v1945
        %2072 = vst [vmem:[%s236 + $0x8] sm:$0xff] %v1948
        %2073 = vst [vmem:[%s236 + $0x10] sm:$0xff] %v1953
        %2074 = vst [vmem:[%s236 + $0x18] sm:$0xff] %v1956
        %2075 = vst [vmem:[%s236 + $0x20] sm:$0xff] %v1961
        %2076 = vst [vmem:[%s236 + $0x28] sm:$0xff] %v1964
        %2077 = vst [vmem:[%s236 + $0x30] sm:$0xff] %v1969
        %2078 = vst [vmem:[%s236 + $0x38] sm:$0xff] %v1972
        %2079 = vst [vmem:[%s236 + $0x40] sm:$0xff] %v1977
        %2080 = vst [vmem:[%s236 + $0x48] sm:$0xff] %v1980
        %2081 = vst [vmem:[%s236 + $0x50] sm:$0xff] %v1985
        %2082 = vst [vmem:[%s236 + $0x58] sm:$0xff] %v1988
        %2083 = vst [vmem:[%s236 + $0x60] sm:$0xff] %v1993
        %2084 = vst [vmem:[%s236 + $0x68] sm:$0xff] %v1996
        %2085 = vst [vmem:[%s236 + $0x70] sm:$0xff] %v2001
        %2086 = vst [vmem:[%s236 + $0x78] sm:$0xff] %v2004
        %2087 = vst [vmem:[%s236 + $0x80] sm:$0xff] %v2009
        %2088 = vst [vmem:[%s236 + $0x88] sm:$0xff] %v2012
        %2089 = vst [vmem:[%s236 + $0x90] sm:$0xff] %v2017
        %2090 = vst [vmem:[%s236 + $0x98] sm:$0xff] %v2020
        %2091 = vst [vmem:[%s236 + $0xa0] sm:$0xff] %v2025
        %2092 = vst [vmem:[%s236 + $0xa8] sm:$0xff] %v2028
        %2093 = vst [vmem:[%s236 + $0xb0] sm:$0xff] %v2033
        %2094 = vst [vmem:[%s236 + $0xb8] sm:$0xff] %v2036
        %2095 = vst [vmem:[%s236 + $0xc0] sm:$0xff] %v2041
        %2096 = vst [vmem:[%s236 + $0xc8] sm:$0xff] %v2044
        %2097 = vst [vmem:[%s236 + $0xd0] sm:$0xff] %v2049
        %2098 = vst [vmem:[%s236 + $0xd8] sm:$0xff] %v2052
        %2099 = vst [vmem:[%s236 + $0xe0] sm:$0xff] %v2057
        %2100 = vst [vmem:[%s236 + $0xe8] sm:$0xff] %v2060
        %2101 = vst [vmem:[%s236 + $0xf0] sm:$0xff] %v2065
        %2102 = vst [vmem:[%s236 + $0xf8] sm:$0xff] %v2068
        %s2103 = sand.u32 %s153, 1
        %s2104 = scalar_lea.sflag [#allocation3], %s2103
        %s2105 = sand.u32 %s153, 1
        %s2106 = smul.addr %s2105, 256
        %s2107 = scalar_lea.vmem [#allocation2], %s2106
        // Predicated region
        $region41: #{adapt_layer_pallas.1} parent=39 // pred_check
          %p2108 = pneg %p163
        $region42: #{adapt_layer_pallas.1} parent=39 // pred_check_branch
          %2110 = sbr.rel (%p2108) target = $region44
        $region43: #{adapt_layer_pallas.1} parent=39 // pred_region
          %s2111 = smul.u32 16, %s24
          %s2113 = ssub.s32 4096, 4096
          %2114 = vsyncadd %s2104, %s2113
          %s2115 = smul.addr %s2111, 2
          %s2116 = smul.addr %s23, 32
          %s2117 = sadd.s32 %s2115, %s2116
          %s2118 = smul.addr %s2117, 128
          %s2119 = scalar_lea.hbm %s5, %s2118
          %s2120 = sshll.u32 %s2107, 4
          %s2121 = int_to_ptr.vmem [resolvable:$true] %s2120
          %2126 = dma.vmem_to_hbm [thread:$0]  %s2121, 4096, %s2119, %s2104, 128, 128, 8
        $region44: #{adapt_layer_pallas.1} parent=39 // pred_fallthru
          _
      $region40: #{adapt_layer_pallas.1} parent=5 // pred_fallthru
        _
      %p2127 = scmp.le.s32.totalorder 2, %s14
      // Predicated region
      $region45: #{adapt_layer_pallas.1} parent=5 // pred_check
        %p2128 = pneg %p2127
      $region46: #{adapt_layer_pallas.1} parent=5 // pred_check_branch
        %2130 = sbr.rel (%p2128) target = $region48
      $region47: #{adapt_layer_pallas.1} parent=5 // pred_region
        %s2131 = ssub.s32 %s14, 2
        // Predicated region
        $region49: #{adapt_layer_pallas.1} parent=47 // pred_check
          %p2132 = pneg %p169
        $region50: #{adapt_layer_pallas.1} parent=47 // pred_check_branch
          %2134 = sbr.rel (%p2132) target = $region52
        $region51: #{adapt_layer_pallas.1} parent=47 // pred_region
          %s2135 = sand.u32 %s154, 1
          %s2136 = scalar_lea.sflag [#allocation3], %s2135
          %s2137 = sand.u32 %s154, 1
          %s2138 = smul.addr %s2137, 256
          %s2139 = scalar_lea.vmem [#allocation2], %s2138
          %2140 = dma.done %s2136, 4096
        $region52: #{adapt_layer_pallas.1} parent=47 // pred_fallthru
          _
      $region48: #{adapt_layer_pallas.1} parent=5 // pred_fallthru
        _
    $region6: #{adapt_layer_pallas.1} parent=1 // loop_footer
      %s18 = sadd.s32 1, %s14
    $region7: #{adapt_layer_pallas.1} parent=1 // loop_footer_branch
      %13 = sbr.rel target = $region3
    $region8: #{adapt_layer_pallas.1} parent=1 // loop_exit
      _
    %2141 = vsyncpa [#allocation3], 1
    %s2142 = scalar_lea.sflag [#allocation3], 1
    %2143 = vsyncpa %s2142, 1

</llo_original>
